<compile_context>
chip_gen: v5e
topology: v5e:2x2
jax: 0.10.0
libtpu: 0.0.40
codegen_flags: <defaults>
</compile_context>

<pallas_src>
import jax
import jax.numpy as jnp
from jax.experimental import pallas as pl
from jax.experimental.pallas import tpu as pltpu


# --------------------------------------------------------------------------- #
# Fused 3-layer GCN branch kernel (one grid step == one branch of the pair)
#   h1  = ReLU(Â1 @ (X  @ W1) + b1)
#   h2  = ReLU(Â2 @ (h1 @ W2) + b2)
#   out =       Â3 @ (h2 @ W3) + b3
# --------------------------------------------------------------------------- #
def gcn_branch_pair_kernel(a1_ref, a2_ref, a3_ref, x_ref,
                           w1_ref, b1_ref, w2_ref, b2_ref, w3_ref, b3_ref,
                           out_ref):
    def conv(adj, h, w, b, relu):
        # Both dots run on the MXU with bf16 operands / f32 accumulation.
        xw = jnp.dot(h, w, preferred_element_type=jnp.float32)
        out = jnp.dot(adj, xw.astype(jnp.bfloat16),
                      preferred_element_type=jnp.float32) + b
        if relu:
            out = jnp.maximum(out, 0.0)          # f32 epilogue (works on v5e too)
        return out

    h = conv(a1_ref[...], x_ref[...], w1_ref[...], b1_ref[...], True)
    # TODO(synk): Dropout(args.dropout) omitted (inference semantics).
    h = conv(a2_ref[...], h.astype(jnp.bfloat16), w2_ref[...], b2_ref[...], True)
    out_ref[...] = conv(a3_ref[...], h.astype(jnp.bfloat16),
                        w3_ref[...], b3_ref[...], False)


def fused_gcn_branch_pair(a1, a2, a3, x, w1, b1, w2, b2, w3, b3):
    """Run two stacked GCN branches (leading dim 2) in one pallas_call."""
    nbr, n_p, _ = a1.shape
    fin_p = x.shape[2]
    h_p = w1.shape[2]
    c_p = w3.shape[2]

    # Rough per-step VMEM budget check (double-buffered inputs + output).
    per_step = (3 * n_p * n_p + n_p * fin_p + fin_p * h_p + h_p * h_p
                + h_p * c_p) * 2 + (2 * h_p + c_p) * 4 + n_p * c_p * 4
    assert 2 * per_step < 20 * 1024 * 1024, (
        "graph too large for the fully fused VMEM-resident branch kernel")

    return pl.pallas_call(
        gcn_branch_pair_kernel,
        out_shape=jax.ShapeDtypeStruct((nbr, n_p, c_p), jnp.float32),
        grid=(nbr,),
        in_specs=[
            pl.BlockSpec((None, n_p, n_p), lambda b: (b, 0, 0)),    # Â layer 1
            pl.BlockSpec((None, n_p, n_p), lambda b: (b, 0, 0)),    # Â layer 2
            pl.BlockSpec((None, n_p, n_p), lambda b: (b, 0, 0)),    # Â layer 3
            pl.BlockSpec((None, n_p, fin_p), lambda b: (b, 0, 0)),  # X
            pl.BlockSpec((None, fin_p, h_p), lambda b: (b, 0, 0)),  # W1
            pl.BlockSpec((None, 1, h_p), lambda b: (b, 0, 0)),      # b1
            pl.BlockSpec((None, h_p, h_p), lambda b: (b, 0, 0)),    # W2
            pl.BlockSpec((None, 1, h_p), lambda b: (b, 0, 0)),      # b2
            pl.BlockSpec((None, h_p, c_p), lambda b: (b, 0, 0)),    # W3
            pl.BlockSpec((None, 1, c_p), lambda b: (b, 0, 0)),      # b3
        ],
        out_specs=pl.BlockSpec((None, n_p, c_p), lambda b: (b, 0, 0)),
        compiler_params=pltpu.CompilerParams(
            dimension_semantics=("parallel",)),
    )(a1, a2, a3, x, w1, b1, w2, b2, w3, b3)


# --------------------------------------------------------------------------- #
# One-time preprocessing: pad to lane-dense 128 multiples, cast to bf16, stack
# the two branches of a pair on a leading axis.  Zero padding is exact for GCN:
# padded adjacency rows/cols are zero, padded weight/bias columns are zero, so
# padded rows never contribute to valid rows of the next layer.
# --------------------------------------------------------------------------- #
def _round_up(v, m):
    return ((v + m - 1) // m) * m


def _pad_to(a, shape, dtype):
    out = jnp.zeros(shape, dtype)
    idx = tuple(slice(0, s) for s in a.shape)
    return out.at[idx].set(a.astype(dtype))


def _prep_branch_pair(adj_triples, xs, conv_triples):
    n, fin = xs[0].shape
    nhid = conv_triples[0][0][0].shape[1]
    nclass = conv_triples[0][2][0].shape[1]
    n_p = _round_up(n, 128)
    fin_p = _round_up(fin, 128)
    h_p = _round_up(nhid, 128)
    c_p = _round_up(nclass, 128)

    def stack_adj(layer):
        return jnp.stack([_pad_to(t[layer], (n_p, n_p), jnp.bfloat16)
                          for t in adj_triples])

    def stack_w(layer, rows, cols):
        return jnp.stack([_pad_to(c[layer][0], (rows, cols), jnp.bfloat16)
                          for c in conv_triples])

    def stack_b(layer, cols):
        return jnp.stack([_pad_to(c[layer][1][None, :], (1, cols), jnp.float32)
                          for c in conv_triples])

    a1, a2, a3 = stack_adj(0), stack_adj(1), stack_adj(2)
    x = jnp.stack([_pad_to(xi, (n_p, fin_p), jnp.bfloat16) for xi in xs])
    w1, b1 = stack_w(0, fin_p, h_p), stack_b(0, h_p)
    w2, b2 = stack_w(1, h_p, h_p), stack_b(1, h_p)
    w3, b3 = stack_w(2, h_p, c_p), stack_b(2, c_p)
    return (a1, a2, a3, x, w1, b1, w2, b2, w3, b3), (n, nclass)


# --------------------------------------------------------------------------- #
# GCNLayer forward (replicates the PyTorch module, eval mode)
# --------------------------------------------------------------------------- #
def gcn_layer_forward(ds, p):
    # Pair 1: Lnc_f (branch 0) and Lnc_m (branch 1).  Lnc_m's conv1 uses the
    # Lnc_f graph, exactly as in the PyTorch forward.
    lnc_args, (n_lnc, nclass) = _prep_branch_pair(
        adj_triples=[(ds["Lnc_f_adj"], ds["Lnc_f_adj"], ds["Lnc_f_adj"]),
                     (ds["Lnc_f_adj"], ds["Lnc_m_adj"], ds["Lnc_m_adj"])],
        xs=[ds["Lnc_f_features"], ds["Lnc_m_features"]],
        conv_triples=[(p["conv1_lnc_f"], p["conv2_lnc_f"], p["conv3_lnc_f"]),
                      (p["conv1_lnc_m"], p["conv2_lnc_m"], p["conv3_lnc_m"])])
    out_lnc = fused_gcn_branch_pair(*lnc_args)

    # Pair 2: Gene_f (branch 0) and Gene_m (branch 1).  Gene_m reuses
    # conv1_gene_f / conv2_gene_f weights and the Gene_f graph for conv1.
    gene_args, (n_gene, _) = _prep_branch_pair(
        adj_triples=[(ds["Gene_f_adj"], ds["Gene_f_adj"], ds["Gene_f_adj"]),
                     (ds["Gene_f_adj"], ds["Gene_m_adj"], ds["Gene_m_adj"])],
        xs=[ds["Gene_f_features"], ds["Gene_m_features"]],
        conv_triples=[(p["conv1_gene_f"], p["conv2_gene_f"], p["conv3_gene_f"]),
                      (p["conv1_gene_f"], p["conv2_gene_f"], p["conv3_gene_m"])])
    out_gene = fused_gcn_branch_pair(*gene_args)

    x = out_lnc[0, :n_lnc, :nclass]
    x2 = out_lnc[1, :n_lnc, :nclass]
    y = out_gene[0, :n_gene, :nclass]
    y2 = out_gene[1, :n_gene, :nclass]
    return x, y, x2, y2


# --------------------------------------------------------------------------- #
# Pure-JAX reference with the same numeric recipe (bf16 MXU operands, f32
# accumulation / elementwise, bf16 intermediates between layers).
# --------------------------------------------------------------------------- #
def gcn_conv_ref(adj, x, w, b, relu):
    xw = jnp.dot(x.astype(jnp.bfloat16), w.astype(jnp.bfloat16),
                 preferred_element_type=jnp.float32)
    out = jnp.dot(adj.astype(jnp.bfloat16), xw.astype(jnp.bfloat16),
                  preferred_element_type=jnp.float32) + b.astype(jnp.float32)
    return jnp.maximum(out, 0.0) if relu else out


def gcn_branch_ref(x, adjs, convs):
    (a1, a2, a3) = adjs
    (w1, b1), (w2, b2), (w3, b3) = convs
    h = gcn_conv_ref(a1, x, w1, b1, True)
    h = gcn_conv_ref(a2, h, w2, b2, True)
    return gcn_conv_ref(a3, h, w3, b3, False)


def gcn_layer_forward_ref(ds, p):
    x = gcn_branch_ref(ds["Lnc_f_features"],
                       (ds["Lnc_f_adj"], ds["Lnc_f_adj"], ds["Lnc_f_adj"]),
                       (p["conv1_lnc_f"], p["conv2_lnc_f"], p["conv3_lnc_f"]))
    y = gcn_branch_ref(ds["Gene_f_features"],
                       (ds["Gene_f_adj"], ds["Gene_f_adj"], ds["Gene_f_adj"]),
                       (p["conv1_gene_f"], p["conv2_gene_f"], p["conv3_gene_f"]))
    x2 = gcn_branch_ref(ds["Lnc_m_features"],
                        (ds["Lnc_f_adj"], ds["Lnc_m_adj"], ds["Lnc_m_adj"]),
                        (p["conv1_lnc_m"], p["conv2_lnc_m"], p["conv3_lnc_m"]))
    y2 = gcn_branch_ref(ds["Gene_m_features"],
                        (ds["Gene_f_adj"], ds["Gene_m_adj"], ds["Gene_m_adj"]),
                        (p["conv1_gene_f"], p["conv2_gene_f"], p["conv3_gene_m"]))
    return x, y, x2, y2


# --------------------------------------------------------------------------- #
# Deterministic example data / parameters
# --------------------------------------------------------------------------- #
def glorot(key, shape):
    fan_in, fan_out = shape
    bound = jnp.sqrt(6.0 / (fan_in + fan_out))
    return jax.random.uniform(key, shape, jnp.float32, minval=-bound, maxval=bound)


def make_conv_params(key, fin, fout):
    kw, kb = jax.random.split(key)
    return glorot(kw, (fin, fout)), 0.1 * jax.random.normal(kb, (fout,), jnp.float32)


def make_adj(key, n, p=0.3):
    a = (jax.random.uniform(key, (n, n)) < p).astype(jnp.float32)
    return jnp.maximum(a, a.T) * (1.0 - jnp.eye(n, dtype=jnp.float32))


def gcn_normalize(a):
    a_hat = a + jnp.eye(a.shape[0], dtype=a.dtype)          # add self loops
    d_inv_sqrt = 1.0 / jnp.sqrt(jnp.sum(a_hat, axis=1))
    return a_hat * d_inv_sqrt[:, None] * d_inv_sqrt[None, :]


if __name__ == "__main__":
    # Small shapes consistent with the module.  g_m_nfeat == g_f_nfeat is
    # required because the original forward reuses conv1_gene_f on Gene_m.
    N_LNC, N_GENE = 24, 40
    L_F_NFEAT, G_F_NFEAT, G_M_NFEAT = 32, 48, 48
    NHID, NCLASS = 128, 8
    DROPOUT = 0.5                # unused (eval mode)

    key = jax.random.PRNGKey(0)
    ks = jax.random.split(key, 18)

    dataset = {
        "Lnc_f_features": jax.random.normal(ks[0], (N_LNC, L_F_NFEAT), jnp.float32),
        "Lnc_m_features": jax.random.normal(ks[1], (N_LNC, L_F_NFEAT), jnp.float32),
        "Gene_f_features": jax.random.normal(ks[2], (N_GENE, G_F_NFEAT), jnp.float32),
        "Gene_m_features": jax.random.normal(ks[3], (N_GENE, G_M_NFEAT), jnp.float32),
        "Lnc_f_adj": gcn_normalize(make_adj(ks[4], N_LNC)),
        "Lnc_m_adj": gcn_normalize(make_adj(ks[5], N_LNC)),
        "Gene_f_adj": gcn_normalize(make_adj(ks[6], N_GENE)),
        "Gene_m_adj": gcn_normalize(make_adj(ks[7], N_GENE)),
    }

    # conv1_gene_m / conv2_gene_m are constructed in the module but never used
    # in forward, so they are not materialized here.
    params = {
        "conv1_lnc_f": make_conv_params(ks[8], L_F_NFEAT, NHID),
        "conv2_lnc_f": make_conv_params(ks[9], NHID, NHID),
        "conv3_lnc_f": make_conv_params(ks[10], NHID, NCLASS),
        "conv1_gene_f": make_conv_params(ks[11], G_F_NFEAT, NHID),
        "conv2_gene_f": make_conv_params(ks[12], NHID, NHID),
        "conv3_gene_f": make_conv_params(ks[13], NHID, NCLASS),
        "conv1_lnc_m": make_conv_params(ks[14], L_F_NFEAT, NHID),
        "conv2_lnc_m": make_conv_params(ks[15], NHID, NHID),
        "conv3_lnc_m": make_conv_params(ks[16], NHID, NCLASS),
        "conv3_gene_m": make_conv_params(ks[17], NHID, NCLASS),
    }

    outs = gcn_layer_forward(dataset, params)
    outs = jax.block_until_ready(outs)
    refs = gcn_layer_forward_ref(dataset, params)

    expected = [(N_LNC, NCLASS), (N_GENE, NCLASS), (N_LNC, NCLASS), (N_GENE, NCLASS)]
    for o, r, s in zip(outs, refs, expected):
        assert o.shape == s, (o.shape, s)
        assert jnp.allclose(o, r, rtol=1e-2, atol=1e-2), float(jnp.max(jnp.abs(o - r)))

    print("KERNEL_OK")
</pallas_src>

<mosaic_0001>
module attributes {stable_mosaic.version = 11 : i64} {
  func.func @gcn_branch_pair_kernel(%arg0: i32, %arg1: memref<1x128x128xbf16, #tpu.memory_space<vmem>>, %arg2: memref<1x128x128xbf16, #tpu.memory_space<vmem>>, %arg3: memref<1x128x128xbf16, #tpu.memory_space<vmem>>, %arg4: memref<1x128x128xbf16, #tpu.memory_space<vmem>>, %arg5: memref<1x128x128xbf16, #tpu.memory_space<vmem>>, %arg6: memref<1x1x128xf32, #tpu.memory_space<vmem>>, %arg7: memref<1x128x128xbf16, #tpu.memory_space<vmem>>, %arg8: memref<1x1x128xf32, #tpu.memory_space<vmem>>, %arg9: memref<1x128x128xbf16, #tpu.memory_space<vmem>>, %arg10: memref<1x1x128xf32, #tpu.memory_space<vmem>>, %arg11: memref<1x128x128xf32, #tpu.memory_space<vmem>>) attributes {dimension_semantics = [#tpu.dimension_semantics<parallel>], iteration_bounds = array<i64: 2>, scalar_prefetch = 0 : i64, scratch_operands = 0 : i64, tpu.core_type = #tpu.core_type<tc>, window_params = [{transform_indices = @transform_0, window_bounds = array<i64: 1, 128, 128>}, {transform_indices = @transform_1, window_bounds = array<i64: 1, 128, 128>}, {transform_indices = @transform_2, window_bounds = array<i64: 1, 128, 128>}, {transform_indices = @transform_3, window_bounds = array<i64: 1, 128, 128>}, {transform_indices = @transform_4, window_bounds = array<i64: 1, 128, 128>}, {transform_indices = @transform_5, window_bounds = array<i64: 1, 1, 128>}, {transform_indices = @transform_6, window_bounds = array<i64: 1, 128, 128>}, {transform_indices = @transform_7, window_bounds = array<i64: 1, 1, 128>}, {transform_indices = @transform_8, window_bounds = array<i64: 1, 128, 128>}, {transform_indices = @transform_9, window_bounds = array<i64: 1, 1, 128>}, {transform_indices = @transform_10, window_bounds = array<i64: 1, 128, 128>}]} {
    %c0 = arith.constant 0 : index
    %c0_0 = arith.constant 0 : index
    %c0_1 = arith.constant 0 : index
    %0 = vector.load %arg1[%c0, %c0_0, %c0_1] : memref<1x128x128xbf16, #tpu.memory_space<vmem>>, vector<1x128x128xbf16>
    %1 = vector.shape_cast %0 : vector<1x128x128xbf16> to vector<128x128xbf16>
    %c0_2 = arith.constant 0 : index
    %c0_3 = arith.constant 0 : index
    %c0_4 = arith.constant 0 : index
    %2 = vector.load %arg4[%c0_2, %c0_3, %c0_4] : memref<1x128x128xbf16, #tpu.memory_space<vmem>>, vector<1x128x128xbf16>
    %3 = vector.shape_cast %2 : vector<1x128x128xbf16> to vector<128x128xbf16>
    %c0_5 = arith.constant 0 : index
    %c0_6 = arith.constant 0 : index
    %c0_7 = arith.constant 0 : index
    %4 = vector.load %arg5[%c0_5, %c0_6, %c0_7] : memref<1x128x128xbf16, #tpu.memory_space<vmem>>, vector<1x128x128xbf16>
    %5 = vector.shape_cast %4 : vector<1x128x128xbf16> to vector<128x128xbf16>
    %c0_8 = arith.constant 0 : index
    %c0_9 = arith.constant 0 : index
    %c0_10 = arith.constant 0 : index
    %6 = vector.load %arg6[%c0_8, %c0_9, %c0_10] : memref<1x1x128xf32, #tpu.memory_space<vmem>>, vector<1x1x128xf32>
    %7 = vector.shape_cast %6 : vector<1x1x128xf32> to vector<1x128xf32>
    %cst = arith.constant dense<0.000000e+00> : vector<128x128xf32>
    %8 = tpu.matmul %3, %5, %cst {dimension_numbers = #tpu.dot_dimension_numbers<[1], [0], [0], [1], [0, 0, 1, 1], [], []>} : vector<128x128xbf16>, vector<128x128xbf16>, vector<128x128xf32> -> vector<128x128xf32>
    %9 = arith.truncf %8 : vector<128x128xf32> to vector<128x128xbf16>
    %cst_11 = arith.constant dense<0.000000e+00> : vector<128x128xf32>
    %10 = tpu.matmul %1, %9, %cst_11 {dimension_numbers = #tpu.dot_dimension_numbers<[1], [0], [0], [1], [0, 0, 1, 1], [], []>} : vector<128x128xbf16>, vector<128x128xbf16>, vector<128x128xf32> -> vector<128x128xf32>
    %11 = vector.broadcast %7 : vector<1x128xf32> to vector<128x128xf32>
    %12 = arith.addf %10, %11 : vector<128x128xf32>
    %cst_12 = arith.constant 0.000000e+00 : f32
    %13 = vector.broadcast %cst_12 : f32 to vector<128x128xf32>
    %14 = arith.maximumf %12, %13 : vector<128x128xf32>
    %c0_13 = arith.constant 0 : index
    %c0_14 = arith.constant 0 : index
    %c0_15 = arith.constant 0 : index
    %15 = vector.load %arg2[%c0_13, %c0_14, %c0_15] : memref<1x128x128xbf16, #tpu.memory_space<vmem>>, vector<1x128x128xbf16>
    %16 = vector.shape_cast %15 : vector<1x128x128xbf16> to vector<128x128xbf16>
    %17 = arith.truncf %14 : vector<128x128xf32> to vector<128x128xbf16>
    %c0_16 = arith.constant 0 : index
    %c0_17 = arith.constant 0 : index
    %c0_18 = arith.constant 0 : index
    %18 = vector.load %arg7[%c0_16, %c0_17, %c0_18] : memref<1x128x128xbf16, #tpu.memory_space<vmem>>, vector<1x128x128xbf16>
    %19 = vector.shape_cast %18 : vector<1x128x128xbf16> to vector<128x128xbf16>
    %c0_19 = arith.constant 0 : index
    %c0_20 = arith.constant 0 : index
    %c0_21 = arith.constant 0 : index
    %20 = vector.load %arg8[%c0_19, %c0_20, %c0_21] : memref<1x1x128xf32, #tpu.memory_space<vmem>>, vector<1x1x128xf32>
    %21 = vector.shape_cast %20 : vector<1x1x128xf32> to vector<1x128xf32>
    %cst_22 = arith.constant dense<0.000000e+00> : vector<128x128xf32>
    %22 = tpu.matmul %17, %19, %cst_22 {dimension_numbers = #tpu.dot_dimension_numbers<[1], [0], [0], [1], [0, 0, 1, 1], [], []>} : vector<128x128xbf16>, vector<128x128xbf16>, vector<128x128xf32> -> vector<128x128xf32>
    %23 = arith.truncf %22 : vector<128x128xf32> to vector<128x128xbf16>
    %cst_23 = arith.constant dense<0.000000e+00> : vector<128x128xf32>
    %24 = tpu.matmul %16, %23, %cst_23 {dimension_numbers = #tpu.dot_dimension_numbers<[1], [0], [0], [1], [0, 0, 1, 1], [], []>} : vector<128x128xbf16>, vector<128x128xbf16>, vector<128x128xf32> -> vector<128x128xf32>
    %25 = vector.broadcast %21 : vector<1x128xf32> to vector<128x128xf32>
    %26 = arith.addf %24, %25 : vector<128x128xf32>
    %cst_24 = arith.constant 0.000000e+00 : f32
    %27 = vector.broadcast %cst_24 : f32 to vector<128x128xf32>
    %28 = arith.maximumf %26, %27 : vector<128x128xf32>
    %c0_25 = arith.constant 0 : index
    %c0_26 = arith.constant 0 : index
    %c0_27 = arith.constant 0 : index
    %29 = vector.load %arg3[%c0_25, %c0_26, %c0_27] : memref<1x128x128xbf16, #tpu.memory_space<vmem>>, vector<1x128x128xbf16>
    %30 = vector.shape_cast %29 : vector<1x128x128xbf16> to vector<128x128xbf16>
    %31 = arith.truncf %28 : vector<128x128xf32> to vector<128x128xbf16>
    %c0_28 = arith.constant 0 : index
    %c0_29 = arith.constant 0 : index
    %c0_30 = arith.constant 0 : index
    %32 = vector.load %arg9[%c0_28, %c0_29, %c0_30] : memref<1x128x128xbf16, #tpu.memory_space<vmem>>, vector<1x128x128xbf16>
    %33 = vector.shape_cast %32 : vector<1x128x128xbf16> to vector<128x128xbf16>
    %c0_31 = arith.constant 0 : index
    %c0_32 = arith.constant 0 : index
    %c0_33 = arith.constant 0 : index
    %34 = vector.load %arg10[%c0_31, %c0_32, %c0_33] : memref<1x1x128xf32, #tpu.memory_space<vmem>>, vector<1x1x128xf32>
    %35 = vector.shape_cast %34 : vector<1x1x128xf32> to vector<1x128xf32>
    %cst_34 = arith.constant dense<0.000000e+00> : vector<128x128xf32>
    %36 = tpu.matmul %31, %33, %cst_34 {dimension_numbers = #tpu.dot_dimension_numbers<[1], [0], [0], [1], [0, 0, 1, 1], [], []>} : vector<128x128xbf16>, vector<128x128xbf16>, vector<128x128xf32> -> vector<128x128xf32>
    %37 = arith.truncf %36 : vector<128x128xf32> to vector<128x128xbf16>
    %cst_35 = arith.constant dense<0.000000e+00> : vector<128x128xf32>
    %38 = tpu.matmul %30, %37, %cst_35 {dimension_numbers = #tpu.dot_dimension_numbers<[1], [0], [0], [1], [0, 0, 1, 1], [], []>} : vector<128x128xbf16>, vector<128x128xbf16>, vector<128x128xf32> -> vector<128x128xf32>
    %39 = vector.broadcast %35 : vector<1x128xf32> to vector<128x128xf32>
    %40 = arith.addf %38, %39 : vector<128x128xf32>
    %c0_36 = arith.constant 0 : index
    %c0_37 = arith.constant 0 : index
    %c0_38 = arith.constant 0 : index
    %41 = vector.load %arg11[%c0_36, %c0_37, %c0_38] : memref<1x128x128xf32, #tpu.memory_space<vmem>>, vector<1x128x128xf32>
    %42 = vector.shape_cast %41 : vector<1x128x128xf32> to vector<128x128xf32>
    %43 = vector.shape_cast %40 : vector<128x128xf32> to vector<1x128x128xf32>
    tpu.vector_store %arg11[%c0_36, %c0_37, %c0_38], %43 {strides = array<i32>} : memref<1x128x128xf32, #tpu.memory_space<vmem>>, vector<1x128x128xf32>,
    return
  }
  func.func @transform_0(%arg0: i32) -> (i32, i32, i32) {
    %c0_i32 = arith.constant 0 : i32
    %c0_i32_0 = arith.constant 0 : i32
    %c0_i32_1 = arith.constant 0 : i32
    return %arg0, %c0_i32, %c0_i32_0 : i32, i32, i32
  }
  func.func @transform_1(%arg0: i32) -> (i32, i32, i32) {
    %c0_i32 = arith.constant 0 : i32
    %c0_i32_0 = arith.constant 0 : i32
    %c0_i32_1 = arith.constant 0 : i32
    return %arg0, %c0_i32, %c0_i32_0 : i32, i32, i32
  }
  func.func @transform_2(%arg0: i32) -> (i32, i32, i32) {
    %c0_i32 = arith.constant 0 : i32
    %c0_i32_0 = arith.constant 0 : i32
    %c0_i32_1 = arith.constant 0 : i32
    return %arg0, %c0_i32, %c0_i32_0 : i32, i32, i32
  }
  func.func @transform_3(%arg0: i32) -> (i32, i32, i32) {
    %c0_i32 = arith.constant 0 : i32
    %c0_i32_0 = arith.constant 0 : i32
    %c0_i32_1 = arith.constant 0 : i32
    return %arg0, %c0_i32, %c0_i32_0 : i32, i32, i32
  }
  func.func @transform_4(%arg0: i32) -> (i32, i32, i32) {
    %c0_i32 = arith.constant 0 : i32
    %c0_i32_0 = arith.constant 0 : i32
    %c0_i32_1 = arith.constant 0 : i32
    return %arg0, %c0_i32, %c0_i32_0 : i32, i32, i32
  }
  func.func @transform_5(%arg0: i32) -> (i32, i32, i32) {
    %c0_i32 = arith.constant 0 : i32
    %c0_i32_0 = arith.constant 0 : i32
    %c0_i32_1 = arith.constant 0 : i32
    return %arg0, %c0_i32, %c0_i32_0 : i32, i32, i32
  }
  func.func @transform_6(%arg0: i32) -> (i32, i32, i32) {
    %c0_i32 = arith.constant 0 : i32
    %c0_i32_0 = arith.constant 0 : i32
    %c0_i32_1 = arith.constant 0 : i32
    return %arg0, %c0_i32, %c0_i32_0 : i32, i32, i32
  }
  func.func @transform_7(%arg0: i32) -> (i32, i32, i32) {
    %c0_i32 = arith.constant 0 : i32
    %c0_i32_0 = arith.constant 0 : i32
    %c0_i32_1 = arith.constant 0 : i32
    return %arg0, %c0_i32, %c0_i32_0 : i32, i32, i32
  }
  func.func @transform_8(%arg0: i32) -> (i32, i32, i32) {
    %c0_i32 = arith.constant 0 : i32
    %c0_i32_0 = arith.constant 0 : i32
    %c0_i32_1 = arith.constant 0 : i32
    return %arg0, %c0_i32, %c0_i32_0 : i32, i32, i32
  }
  func.func @transform_9(%arg0: i32) -> (i32, i32, i32) {
    %c0_i32 = arith.constant 0 : i32
    %c0_i32_0 = arith.constant 0 : i32
    %c0_i32_1 = arith.constant 0 : i32
    return %arg0, %c0_i32, %c0_i32_0 : i32, i32, i32
  }
  func.func @transform_10(%arg0: i32) -> (i32, i32, i32) {
    %c0_i32 = arith.constant 0 : i32
    %c0_i32_0 = arith.constant 0 : i32
    %c0_i32_1 = arith.constant 0 : i32
    return %arg0, %c0_i32, %c0_i32_0 : i32, i32, i32
  }
}

</mosaic_0001>

<llo_original>
// kernel: tpu_custom_call.1
$region0: #{tpu_custom_call.1}
  #allocation0 [shape = 'u32[]', space=smem, size = 0x4, offset = 0x4, fixed_abs, tag = 'smem constant byte address 0x4 - core index']
  #allocation1 [shape = 'u32[72,128]{1,0:T(1,128)}', space=vmem, size = 0x9000, scoped, tag = 'internal scratch']
  %s0 = inlined_call_operand.hbm [shape: bf16[2,128,128], index: 0, kind: input, shape index: {}]
  %s1 = inlined_call_operand.hbm [shape: bf16[2,128,128], index: 1, kind: input, shape index: {}]
  %s2 = inlined_call_operand.hbm [shape: bf16[2,128,128], index: 2, kind: input, shape index: {}]
  %s3 = inlined_call_operand.hbm [shape: bf16[2,128,128], index: 3, kind: input, shape index: {}]
  %s4 = inlined_call_operand.hbm [shape: bf16[2,128,128], index: 4, kind: input, shape index: {}]
  %s5 = inlined_call_operand.vmem [shape: f32[2,1,128], index: 5, kind: input, shape index: {}]
  %s6 = inlined_call_operand.hbm [shape: bf16[2,128,128], index: 6, kind: input, shape index: {}]
  %s7 = inlined_call_operand.vmem [shape: f32[2,1,128], index: 7, kind: input, shape index: {}]
  %s8 = inlined_call_operand.hbm [shape: bf16[2,128,128], index: 8, kind: input, shape index: {}]
  %s9 = inlined_call_operand.vmem [shape: f32[2,1,128], index: 9, kind: input, shape index: {}]
  %s10 = inlined_call_operand.hbm [shape: f32[2,128,128], index: 10, kind: output, shape index: {}]
  %s11 = sld [smem:[#allocation0]]
  $region101: #{tpu_custom_call.1} parent=0
    _
  %s13 = ssub.s32 1, %s11
  %s14 = scalar_select 0, %s13, %s11
  $region1: #{tpu_custom_call.1} parent=0
    #allocation2 [shape = 'u8[65536]{0}', space=vmem, size = 0x10000, scoped, tag = 'input window, operand 0']
    #allocation3 [shape = 's32[2]{0}', space=sflag, size = 0x8, scoped, tag = 'scoped memory for tpu_custom_call.1']
    #allocation4 [shape = 's32[2]{0}', space=sflag, size = 0x8, scoped, tag = 'scoped memory for tpu_custom_call.1']
    #allocation5 [shape = 'u8[65536]{0}', space=vmem, size = 0x10000, scoped, tag = 'input window, operand 1']
    #allocation6 [shape = 's32[2]{0}', space=sflag, size = 0x8, scoped, tag = 'scoped memory for tpu_custom_call.1']
    #allocation7 [shape = 'u8[65536]{0}', space=vmem, size = 0x10000, scoped, tag = 'input window, operand 2']
    #allocation8 [shape = 'u8[65536]{0}', space=vmem, size = 0x10000, scoped, tag = 'input window, operand 3']
    #allocation9 [shape = 's32[2]{0}', space=sflag, size = 0x8, scoped, tag = 'scoped memory for tpu_custom_call.1']
    #allocation10 [shape = 'u8[65536]{0}', space=vmem, size = 0x10000, scoped, tag = 'input window, operand 4']
    #allocation11 [shape = 'u8[65536]{0}', space=vmem, size = 0x10000, scoped, tag = 'input window, operand 6']
    #allocation12 [shape = 's32[2]{0}', space=sflag, size = 0x8, scoped, tag = 'scoped memory for tpu_custom_call.1']
    #allocation13 [shape = 'u8[65536]{0}', space=vmem, size = 0x10000, scoped, tag = 'input window, operand 8']
    #allocation14 [shape = 'u8[131072]{0}', space=vmem, size = 0x20000, scoped, tag = 'output window, operand 0']
    %15 = vsyncpa [#allocation3], 0
    %s16 = scalar_lea.sflag [#allocation3], 1
    %17 = vsyncpa %s16, 0
    %18 = vsyncpa [#allocation6], 0
    %s19 = scalar_lea.sflag [#allocation6], 1
    %20 = vsyncpa %s19, 0
    %21 = vsyncpa [#allocation9], 0
    %s22 = scalar_lea.sflag [#allocation9], 1
    %23 = vsyncpa %s22, 0
    %24 = vsyncpa [#allocation12], 0
    %s25 = scalar_lea.sflag [#allocation12], 1
    %26 = vsyncpa %s25, 0
    %27 = vsyncpa [#allocation4], 0
    %s28 = scalar_lea.sflag [#allocation4], 1
    %29 = vsyncpa %s28, 0
    loop: start=0, step=1, limit=4
    $region2: #{tpu_custom_call.1} parent=1 // loop_pre_header
      _
    $region3: #{tpu_custom_call.1} parent=1 // loop_header
      %s31 = sphi 0, %s35
      %p32 = scmp.ge.s32.totalorder %s31, 4
      %s41 = sphi 0, %s43
      %s44 = sphi 0, %s41
      %s45 = sphi 0, %s44
      %s61 = sphi 0, %s45
      %s67 = sphi 0, %s69
      %s70 = sphi 0, %s67
      %s71 = sphi 0, %s70
      %s87 = sphi 0, %s71
      %s93 = sphi 0, %s95
      %s96 = sphi 0, %s93
      %s97 = sphi 0, %s96
      %s113 = sphi 0, %s97
      %s119 = sphi 0, %s121
      %s122 = sphi 0, %s119
      %s123 = sphi 0, %s122
      %s139 = sphi 0, %s123
      %s145 = sphi 0, %s147
      %s148 = sphi 0, %s145
      %s149 = sphi 0, %s148
      %s165 = sphi 0, %s149
      %s171 = sphi 0, %s173
      %s174 = sphi 0, %s171
      %s175 = sphi 0, %s174
      %s191 = sphi 0, %s175
      %s197 = sphi 0, %s199
      %s200 = sphi 0, %s197
      %s201 = sphi 0, %s200
      %s217 = sphi 0, %s201
      %s223 = sphi 0, %s225
      %s226 = sphi 0, %s223
      %s227 = sphi 0, %s226
      %s243 = sphi 0, %s227
      %s249 = sphi 0, %s251
      %s252 = sphi 0, %s249
      %s253 = sphi 0, %s252
      %s269 = sphi 0, %s253
      %s275 = sphi 0, %s277
      %s278 = sphi 0, %s275
      %s279 = sphi 0, %s278
      %s295 = sphi 0, %s279
      %s301 = sphi 0, %s303
      %s304 = sphi 0, %s301
      %s305 = sphi 0, %s304
      %s321 = sphi 0, %s305
    $region4: #{tpu_custom_call.1} parent=1 // loop_header_branch
      %34 = sbr.rel (%p32) target = $region8
    $region5: #{tpu_custom_call.1} parent=1 // loop_body
      %s36 = ssub.s32 %s31, 1
      %s37 = ssub.s32 %s31, 2
      %s38 = sadd.s32 %s31, 1
      %s39 = ssub.s32 %s31, %s38
      %p40 = scmp.eq.s32.totalorder %s39, 0
      %s42 = sadd.s32 %s41, 1
      %s43 = scalar_select %p40, %s41, %s42
      %p46 = pneg %p40
      %p47 = scmp.eq.s32.totalorder %s31, 1
      %p48 = por %p46, %p47
      %p49 = scmp.ne.s32.totalorder %s41, %s44
      %p50 = scmp.eq.s32.totalorder %s31, 0
      %p51 = por %p49, %p50
      %p52 = scmp.ne.s32.totalorder %s41, %s44
      %p53 = scmp.eq.s32.totalorder %s36, 1
      %p54 = por %p52, %p53
      %p55 = scmp.ne.s32.totalorder %s44, %s45
      %p56 = scmp.eq.s32.totalorder %s36, 0
      %p57 = por %p55, %p56
      %p58 = scmp.ne.s32.totalorder %s44, %s45
      %p59 = scmp.eq.s32.totalorder %s37, 1
      %p60 = por %p58, %p59
      %p62 = scmp.ne.s32.totalorder %s45, %s61
      %p63 = scmp.eq.s32.totalorder %s37, 0
      %p64 = por %p62, %p63
      %s65 = ssub.s32 %s31, %s38
      %p66 = scmp.eq.s32.totalorder %s65, 0
      %s68 = sadd.s32 %s67, 1
      %s69 = scalar_select %p66, %s67, %s68
      %p72 = pneg %p66
      %p73 = scmp.eq.s32.totalorder %s31, 1
      %p74 = por %p72, %p73
      %p75 = scmp.ne.s32.totalorder %s67, %s70
      %p76 = scmp.eq.s32.totalorder %s31, 0
      %p77 = por %p75, %p76
      %p78 = scmp.ne.s32.totalorder %s67, %s70
      %p79 = scmp.eq.s32.totalorder %s36, 1
      %p80 = por %p78, %p79
      %p81 = scmp.ne.s32.totalorder %s70, %s71
      %p82 = scmp.eq.s32.totalorder %s36, 0
      %p83 = por %p81, %p82
      %p84 = scmp.ne.s32.totalorder %s70, %s71
      %p85 = scmp.eq.s32.totalorder %s37, 1
      %p86 = por %p84, %p85
      %p88 = scmp.ne.s32.totalorder %s71, %s87
      %p89 = scmp.eq.s32.totalorder %s37, 0
      %p90 = por %p88, %p89
      %s91 = ssub.s32 %s31, %s38
      %p92 = scmp.eq.s32.totalorder %s91, 0
      %s94 = sadd.s32 %s93, 1
      %s95 = scalar_select %p92, %s93, %s94
      %p98 = pneg %p92
      %p99 = scmp.eq.s32.totalorder %s31, 1
      %p100 = por %p98, %p99
      %p101 = scmp.ne.s32.totalorder %s93, %s96
      %p102 = scmp.eq.s32.totalorder %s31, 0
      %p103 = por %p101, %p102
      %p104 = scmp.ne.s32.totalorder %s93, %s96
      %p105 = scmp.eq.s32.totalorder %s36, 1
      %p106 = por %p104, %p105
      %p107 = scmp.ne.s32.totalorder %s96, %s97
      %p108 = scmp.eq.s32.totalorder %s36, 0
      %p109 = por %p107, %p108
      %p110 = scmp.ne.s32.totalorder %s96, %s97
      %p111 = scmp.eq.s32.totalorder %s37, 1
      %p112 = por %p110, %p111
      %p114 = scmp.ne.s32.totalorder %s97, %s113
      %p115 = scmp.eq.s32.totalorder %s37, 0
      %p116 = por %p114, %p115
      %s117 = ssub.s32 %s31, %s38
      %p118 = scmp.eq.s32.totalorder %s117, 0
      %s120 = sadd.s32 %s119, 1
      %s121 = scalar_select %p118, %s119, %s120
      %p124 = pneg %p118
      %p125 = scmp.eq.s32.totalorder %s31, 1
      %p126 = por %p124, %p125
      %p127 = scmp.ne.s32.totalorder %s119, %s122
      %p128 = scmp.eq.s32.totalorder %s31, 0
      %p129 = por %p127, %p128
      %p130 = scmp.ne.s32.totalorder %s119, %s122
      %p131 = scmp.eq.s32.totalorder %s36, 1
      %p132 = por %p130, %p131
      %p133 = scmp.ne.s32.totalorder %s122, %s123
      %p134 = scmp.eq.s32.totalorder %s36, 0
      %p135 = por %p133, %p134
      %p136 = scmp.ne.s32.totalorder %s122, %s123
      %p137 = scmp.eq.s32.totalorder %s37, 1
      %p138 = por %p136, %p137
      %p140 = scmp.ne.s32.totalorder %s123, %s139
      %p141 = scmp.eq.s32.totalorder %s37, 0
      %p142 = por %p140, %p141
      %s143 = ssub.s32 %s31, %s38
      %p144 = scmp.eq.s32.totalorder %s143, 0
      %s146 = sadd.s32 %s145, 1
      %s147 = scalar_select %p144, %s145, %s146
      %p150 = pneg %p144
      %p151 = scmp.eq.s32.totalorder %s31, 1
      %p152 = por %p150, %p151
      %p153 = scmp.ne.s32.totalorder %s145, %s148
      %p154 = scmp.eq.s32.totalorder %s31, 0
      %p155 = por %p153, %p154
      %p156 = scmp.ne.s32.totalorder %s145, %s148
      %p157 = scmp.eq.s32.totalorder %s36, 1
      %p158 = por %p156, %p157
      %p159 = scmp.ne.s32.totalorder %s148, %s149
      %p160 = scmp.eq.s32.totalorder %s36, 0
      %p161 = por %p159, %p160
      %p162 = scmp.ne.s32.totalorder %s148, %s149
      %p163 = scmp.eq.s32.totalorder %s37, 1
      %p164 = por %p162, %p163
      %p166 = scmp.ne.s32.totalorder %s149, %s165
      %p167 = scmp.eq.s32.totalorder %s37, 0
      %p168 = por %p166, %p167
      %s169 = ssub.s32 %s31, %s38
      %p170 = scmp.eq.s32.totalorder %s169, 0
      %s172 = sadd.s32 %s171, 1
      %s173 = scalar_select %p170, %s171, %s172
      %p176 = pneg %p170
      %p177 = scmp.eq.s32.totalorder %s31, 1
      %p178 = por %p176, %p177
      %p179 = scmp.ne.s32.totalorder %s171, %s174
      %p180 = scmp.eq.s32.totalorder %s31, 0
      %p181 = por %p179, %p180
      %p182 = scmp.ne.s32.totalorder %s171, %s174
      %p183 = scmp.eq.s32.totalorder %s36, 1
      %p184 = por %p182, %p183
      %p185 = scmp.ne.s32.totalorder %s174, %s175
      %p186 = scmp.eq.s32.totalorder %s36, 0
      %p187 = por %p185, %p186
      %p188 = scmp.ne.s32.totalorder %s174, %s175
      %p189 = scmp.eq.s32.totalorder %s37, 1
      %p190 = por %p188, %p189
      %p192 = scmp.ne.s32.totalorder %s175, %s191
      %p193 = scmp.eq.s32.totalorder %s37, 0
      %p194 = por %p192, %p193
      %s195 = ssub.s32 %s31, %s38
      %p196 = scmp.eq.s32.totalorder %s195, 0
      %s198 = sadd.s32 %s197, 1
      %s199 = scalar_select %p196, %s197, %s198
      %p202 = pneg %p196
      %p203 = scmp.eq.s32.totalorder %s31, 1
      %p204 = por %p202, %p203
      %p205 = scmp.ne.s32.totalorder %s197, %s200
      %p206 = scmp.eq.s32.totalorder %s31, 0
      %p207 = por %p205, %p206
      %p208 = scmp.ne.s32.totalorder %s197, %s200
      %p209 = scmp.eq.s32.totalorder %s36, 1
      %p210 = por %p208, %p209
      %p211 = scmp.ne.s32.totalorder %s200, %s201
      %p212 = scmp.eq.s32.totalorder %s36, 0
      %p213 = por %p211, %p212
      %p214 = scmp.ne.s32.totalorder %s200, %s201
      %p215 = scmp.eq.s32.totalorder %s37, 1
      %p216 = por %p214, %p215
      %p218 = scmp.ne.s32.totalorder %s201, %s217
      %p219 = scmp.eq.s32.totalorder %s37, 0
      %p220 = por %p218, %p219
      %s221 = ssub.s32 %s31, %s38
      %p222 = scmp.eq.s32.totalorder %s221, 0
      %s224 = sadd.s32 %s223, 1
      %s225 = scalar_select %p222, %s223, %s224
      %p228 = pneg %p222
      %p229 = scmp.eq.s32.totalorder %s31, 1
      %p230 = por %p228, %p229
      %p231 = scmp.ne.s32.totalorder %s223, %s226
      %p232 = scmp.eq.s32.totalorder %s31, 0
      %p233 = por %p231, %p232
      %p234 = scmp.ne.s32.totalorder %s223, %s226
      %p235 = scmp.eq.s32.totalorder %s36, 1
      %p236 = por %p234, %p235
      %p237 = scmp.ne.s32.totalorder %s226, %s227
      %p238 = scmp.eq.s32.totalorder %s36, 0
      %p239 = por %p237, %p238
      %p240 = scmp.ne.s32.totalorder %s226, %s227
      %p241 = scmp.eq.s32.totalorder %s37, 1
      %p242 = por %p240, %p241
      %p244 = scmp.ne.s32.totalorder %s227, %s243
      %p245 = scmp.eq.s32.totalorder %s37, 0
      %p246 = por %p244, %p245
      %s247 = ssub.s32 %s31, %s38
      %p248 = scmp.eq.s32.totalorder %s247, 0
      %s250 = sadd.s32 %s249, 1
      %s251 = scalar_select %p248, %s249, %s250
      %p254 = pneg %p248
      %p255 = scmp.eq.s32.totalorder %s31, 1
      %p256 = por %p254, %p255
      %p257 = scmp.ne.s32.totalorder %s249, %s252
      %p258 = scmp.eq.s32.totalorder %s31, 0
      %p259 = por %p257, %p258
      %p260 = scmp.ne.s32.totalorder %s249, %s252
      %p261 = scmp.eq.s32.totalorder %s36, 1
      %p262 = por %p260, %p261
      %p263 = scmp.ne.s32.totalorder %s252, %s253
      %p264 = scmp.eq.s32.totalorder %s36, 0
      %p265 = por %p263, %p264
      %p266 = scmp.ne.s32.totalorder %s252, %s253
      %p267 = scmp.eq.s32.totalorder %s37, 1
      %p268 = por %p266, %p267
      %p270 = scmp.ne.s32.totalorder %s253, %s269
      %p271 = scmp.eq.s32.totalorder %s37, 0
      %p272 = por %p270, %p271
      %s273 = ssub.s32 %s31, %s38
      %p274 = scmp.eq.s32.totalorder %s273, 0
      %s276 = sadd.s32 %s275, 1
      %s277 = scalar_select %p274, %s275, %s276
      %p280 = pneg %p274
      %p281 = scmp.eq.s32.totalorder %s31, 1
      %p282 = por %p280, %p281
      %p283 = scmp.ne.s32.totalorder %s275, %s278
      %p284 = scmp.eq.s32.totalorder %s31, 0
      %p285 = por %p283, %p284
      %p286 = scmp.ne.s32.totalorder %s275, %s278
      %p287 = scmp.eq.s32.totalorder %s36, 1
      %p288 = por %p286, %p287
      %p289 = scmp.ne.s32.totalorder %s278, %s279
      %p290 = scmp.eq.s32.totalorder %s36, 0
      %p291 = por %p289, %p290
      %p292 = scmp.ne.s32.totalorder %s278, %s279
      %p293 = scmp.eq.s32.totalorder %s37, 1
      %p294 = por %p292, %p293
      %p296 = scmp.ne.s32.totalorder %s279, %s295
      %p297 = scmp.eq.s32.totalorder %s37, 0
      %p298 = por %p296, %p297
      %s299 = ssub.s32 %s31, %s38
      %p300 = scmp.eq.s32.totalorder %s299, 0
      %s302 = sadd.s32 %s301, 1
      %s303 = scalar_select %p300, %s301, %s302
      %p306 = pneg %p300
      %p307 = scmp.eq.s32.totalorder %s31, 1
      %p308 = por %p306, %p307
      %p309 = scmp.ne.s32.totalorder %s301, %s304
      %p310 = scmp.eq.s32.totalorder %s31, 0
      %p311 = por %p309, %p310
      %p312 = scmp.ne.s32.totalorder %s301, %s304
      %p313 = scmp.eq.s32.totalorder %s36, 1
      %p314 = por %p312, %p313
      %p315 = scmp.ne.s32.totalorder %s304, %s305
      %p316 = scmp.eq.s32.totalorder %s36, 0
      %p317 = por %p315, %p316
      %p318 = scmp.ne.s32.totalorder %s304, %s305
      %p319 = scmp.eq.s32.totalorder %s37, 1
      %p320 = por %p318, %p319
      %p322 = scmp.ne.s32.totalorder %s305, %s321
      %p323 = scmp.eq.s32.totalorder %s37, 0
      %p324 = por %p322, %p323
      %p325 = scmp.le.s32.totalorder 1, %s31
      %p326 = scmp.lt.s32.totalorder %s31, 3
      %p327 = pnand %p325, %p326
      %p328 = pneg %p327
      // Predicated region
      $region9: #{tpu_custom_call.1} parent=5 // pred_check
        _
      $region10: #{tpu_custom_call.1} parent=5 // pred_check_branch
        %330 = sbr.rel (%p327) target = $region12
      $region11: #{tpu_custom_call.1} parent=5 // pred_region
        %s331 = ssub.s32 %s31, 1
      $region12: #{tpu_custom_call.1} parent=5 // pred_fallthru
        _
      %p332 = scmp.lt.s32.totalorder %s31, 2
      // Predicated region
      $region13: #{tpu_custom_call.1} parent=5 // pred_check
        %p333 = pneg %p332
      $region14: #{tpu_custom_call.1} parent=5 // pred_check_branch
        %335 = sbr.rel (%p333) target = $region16
      $region15: #{tpu_custom_call.1} parent=5 // pred_region
        // Predicated region
        $region17: #{tpu_custom_call.1} parent=15 // pred_check
          %p336 = pneg %p51
        $region18: #{tpu_custom_call.1} parent=15 // pred_check_branch
          %338 = sbr.rel (%p336) target = $region20
        $region19: #{tpu_custom_call.1} parent=15 // pred_region
          %s339 = sand.u32 %s41, 1
          %s340 = scalar_lea.sflag [#allocation3], %s339
          %s341 = sand.u32 %s41, 1
          %s342 = smul.addr %s341, 64
          %s343 = scalar_lea.vmem [#allocation2], %s342
          %345 = vsyncadd %s340, 0
          %s346 = smul.addr %s31, 16
          %s347 = smul.addr %s346, 4
          %s348 = scalar_lea.hbm %s0, %s347
          %s349 = sshll.u32 %s348, 4
          %s350 = int_to_ptr.hbm [resolvable:$true] %s349
          %s351 = sshll.u32 %s343, 4
          %s352 = int_to_ptr.vmem [resolvable:$true] %s351
          %357 = dma.hbm_to_vmem [thread:$0]  %s350, 1024, %s352, %s340, 64, 64, 4
        $region20: #{tpu_custom_call.1} parent=15 // pred_fallthru
          _
        // Predicated region
        $region21: #{tpu_custom_call.1} parent=15 // pred_check
          %p358 = pneg %p77
        $region22: #{tpu_custom_call.1} parent=15 // pred_check_branch
          %360 = sbr.rel (%p358) target = $region24
        $region23: #{tpu_custom_call.1} parent=15 // pred_region
          %s361 = sand.u32 %s31, 1
          %s362 = scalar_lea.sflag [#allocation6], %s361
          %s363 = sand.u32 %s67, 1
          %s364 = smul.addr %s363, 64
          %s365 = scalar_lea.vmem [#allocation5], %s364
          %367 = vsyncadd %s362, 0
          %s368 = smul.addr %s31, 16
          %s369 = smul.addr %s368, 4
          %s370 = scalar_lea.hbm %s1, %s369
          %s371 = sshll.u32 %s370, 4
          %s372 = int_to_ptr.hbm [resolvable:$true] %s371
          %s373 = sshll.u32 %s365, 4
          %s374 = int_to_ptr.vmem [resolvable:$true] %s373
          %379 = dma.hbm_to_vmem [thread:$0]  %s372, 1024, %s374, %s362, 64, 64, 4
        $region24: #{tpu_custom_call.1} parent=15 // pred_fallthru
          _
        // Predicated region
        $region25: #{tpu_custom_call.1} parent=15 // pred_check
          %p380 = pneg %p103
        $region26: #{tpu_custom_call.1} parent=15 // pred_check_branch
          %382 = sbr.rel (%p380) target = $region28
        $region27: #{tpu_custom_call.1} parent=15 // pred_region
          %s383 = sand.u32 %s31, 1
          %s384 = scalar_lea.sflag [#allocation6], %s383
          %s385 = sand.u32 %s93, 1
          %s386 = smul.addr %s385, 64
          %s387 = scalar_lea.vmem [#allocation7], %s386
          %389 = vsyncadd %s384, 0
          %s390 = smul.addr %s31, 16
          %s391 = smul.addr %s390, 4
          %s392 = scalar_lea.hbm %s2, %s391
          %s393 = sshll.u32 %s392, 4
          %s394 = int_to_ptr.hbm [resolvable:$true] %s393
          %s395 = sshll.u32 %s387, 4
          %s396 = int_to_ptr.vmem [resolvable:$true] %s395
          %401 = dma.hbm_to_vmem [thread:$0]  %s394, 1024, %s396, %s384, 64, 64, 4
        $region28: #{tpu_custom_call.1} parent=15 // pred_fallthru
          _
        // Predicated region
        $region29: #{tpu_custom_call.1} parent=15 // pred_check
          %p402 = pneg %p129
        $region30: #{tpu_custom_call.1} parent=15 // pred_check_branch
          %404 = sbr.rel (%p402) target = $region32
        $region31: #{tpu_custom_call.1} parent=15 // pred_region
          %s405 = sand.u32 %s31, 1
          %s406 = scalar_lea.sflag [#allocation9], %s405
          %s407 = sand.u32 %s119, 1
          %s408 = smul.addr %s407, 64
          %s409 = scalar_lea.vmem [#allocation8], %s408
          %411 = vsyncadd %s406, 0
          %s412 = smul.addr %s31, 16
          %s413 = smul.addr %s412, 4
          %s414 = scalar_lea.hbm %s3, %s413
          %s415 = sshll.u32 %s414, 4
          %s416 = int_to_ptr.hbm [resolvable:$true] %s415
          %s417 = sshll.u32 %s409, 4
          %s418 = int_to_ptr.vmem [resolvable:$true] %s417
          %423 = dma.hbm_to_vmem [thread:$0]  %s416, 1024, %s418, %s406, 64, 64, 4
        $region32: #{tpu_custom_call.1} parent=15 // pred_fallthru
          _
        // Predicated region
        $region33: #{tpu_custom_call.1} parent=15 // pred_check
          %p424 = pneg %p155
        $region34: #{tpu_custom_call.1} parent=15 // pred_check_branch
          %426 = sbr.rel (%p424) target = $region36
        $region35: #{tpu_custom_call.1} parent=15 // pred_region
          %s427 = sand.u32 %s31, 1
          %s428 = scalar_lea.sflag [#allocation9], %s427
          %s429 = sand.u32 %s145, 1
          %s430 = smul.addr %s429, 64
          %s431 = scalar_lea.vmem [#allocation10], %s430
          %433 = vsyncadd %s428, 0
          %s434 = smul.addr %s31, 16
          %s435 = smul.addr %s434, 4
          %s436 = scalar_lea.hbm %s4, %s435
          %s437 = sshll.u32 %s436, 4
          %s438 = int_to_ptr.hbm [resolvable:$true] %s437
          %s439 = sshll.u32 %s431, 4
          %s440 = int_to_ptr.vmem [resolvable:$true] %s439
          %445 = dma.hbm_to_vmem [thread:$0]  %s438, 1024, %s440, %s428, 64, 64, 4
        $region36: #{tpu_custom_call.1} parent=15 // pred_fallthru
          _
        // Predicated region
        $region37: #{tpu_custom_call.1} parent=15 // pred_check
          %p446 = pneg %p181
        $region38: #{tpu_custom_call.1} parent=15 // pred_check_branch
          %448 = sbr.rel (%p446) target = $region40
        $region39: #{tpu_custom_call.1} parent=15 // pred_region
          %p449 = scmp.lt.s32.totalorder %s31, 1
          %s450 = scalar_select %p449, %s31, 1
          %s451 = scalar_lea.vmem %s5, %s450
        $region40: #{tpu_custom_call.1} parent=15 // pred_fallthru
          _
        // Predicated region
        $region41: #{tpu_custom_call.1} parent=15 // pred_check
          %p452 = pneg %p207
        $region42: #{tpu_custom_call.1} parent=15 // pred_check_branch
          %454 = sbr.rel (%p452) target = $region44
        $region43: #{tpu_custom_call.1} parent=15 // pred_region
          %s455 = sand.u32 %s31, 1
          %s456 = scalar_lea.sflag [#allocation12], %s455
          %s457 = sand.u32 %s197, 1
          %s458 = smul.addr %s457, 64
          %s459 = scalar_lea.vmem [#allocation11], %s458
          %461 = vsyncadd %s456, 0
          %s462 = smul.addr %s31, 16
          %s463 = smul.addr %s462, 4
          %s464 = scalar_lea.hbm %s6, %s463
          %s465 = sshll.u32 %s464, 4
          %s466 = int_to_ptr.hbm [resolvable:$true] %s465
          %s467 = sshll.u32 %s459, 4
          %s468 = int_to_ptr.vmem [resolvable:$true] %s467
          %473 = dma.hbm_to_vmem [thread:$0]  %s466, 1024, %s468, %s456, 64, 64, 4
        $region44: #{tpu_custom_call.1} parent=15 // pred_fallthru
          _
        // Predicated region
        $region45: #{tpu_custom_call.1} parent=15 // pred_check
          %p474 = pneg %p233
        $region46: #{tpu_custom_call.1} parent=15 // pred_check_branch
          %476 = sbr.rel (%p474) target = $region48
        $region47: #{tpu_custom_call.1} parent=15 // pred_region
          %p477 = scmp.lt.s32.totalorder %s31, 1
          %s478 = scalar_select %p477, %s31, 1
          %s479 = scalar_lea.vmem %s7, %s478
        $region48: #{tpu_custom_call.1} parent=15 // pred_fallthru
          _
        // Predicated region
        $region49: #{tpu_custom_call.1} parent=15 // pred_check
          %p480 = pneg %p259
        $region50: #{tpu_custom_call.1} parent=15 // pred_check_branch
          %482 = sbr.rel (%p480) target = $region52
        $region51: #{tpu_custom_call.1} parent=15 // pred_region
          %s483 = sand.u32 %s31, 1
          %s484 = scalar_lea.sflag [#allocation12], %s483
          %s485 = sand.u32 %s249, 1
          %s486 = smul.addr %s485, 64
          %s487 = scalar_lea.vmem [#allocation13], %s486
          %489 = vsyncadd %s484, 0
          %s490 = smul.addr %s31, 16
          %s491 = smul.addr %s490, 4
          %s492 = scalar_lea.hbm %s8, %s491
          %s493 = sshll.u32 %s492, 4
          %s494 = int_to_ptr.hbm [resolvable:$true] %s493
          %s495 = sshll.u32 %s487, 4
          %s496 = int_to_ptr.vmem [resolvable:$true] %s495
          %501 = dma.hbm_to_vmem [thread:$0]  %s494, 1024, %s496, %s484, 64, 64, 4
        $region52: #{tpu_custom_call.1} parent=15 // pred_fallthru
          _
        // Predicated region
        $region53: #{tpu_custom_call.1} parent=15 // pred_check
          %p502 = pneg %p285
        $region54: #{tpu_custom_call.1} parent=15 // pred_check_branch
          %504 = sbr.rel (%p502) target = $region56
        $region55: #{tpu_custom_call.1} parent=15 // pred_region
          %p505 = scmp.lt.s32.totalorder %s31, 1
          %s506 = scalar_select %p505, %s31, 1
          %s507 = scalar_lea.vmem %s9, %s506
        $region56: #{tpu_custom_call.1} parent=15 // pred_fallthru
          _
      $region16: #{tpu_custom_call.1} parent=5 // pred_fallthru
        _
      %p508 = scmp.le.s32.totalorder 1, %s31
      %p509 = scmp.lt.s32.totalorder %s31, 3
      %p510 = pnand %p508, %p509
      %p511 = pneg %p510
      // Predicated region
      $region57: #{tpu_custom_call.1} parent=5 // pred_check
        _
      $region58: #{tpu_custom_call.1} parent=5 // pred_check_branch
        %513 = sbr.rel (%p510) target = $region60
      $region59: #{tpu_custom_call.1} parent=5 // pred_region
        %s514 = ssub.s32 %s31, 1
        %s515 = sand.u32 %s44, 1
        %s516 = scalar_lea.sflag [#allocation3], %s515
        %s517 = sand.u32 %s44, 1
        %s518 = smul.addr %s517, 64
        %s519 = scalar_lea.vmem [#allocation2], %s518
        // Predicated region
        $region61: #{tpu_custom_call.1} parent=59 // pred_check
          %p520 = pneg %p57
        $region62: #{tpu_custom_call.1} parent=59 // pred_check_branch
          %522 = sbr.rel (%p520) target = $region64
        $region63: #{tpu_custom_call.1} parent=59 // pred_region
          %524 = dma.done %s516, 1024
        $region64: #{tpu_custom_call.1} parent=59 // pred_fallthru
          _
        %s525 = sand.u32 %s36, 1
        %s526 = scalar_lea.sflag [#allocation6], %s525
        %s527 = sand.u32 %s70, 1
        %s528 = smul.addr %s527, 64
        %s529 = scalar_lea.vmem [#allocation5], %s528
        // Predicated region
        $region65: #{tpu_custom_call.1} parent=59 // pred_check
          %p530 = pneg %p83
        $region66: #{tpu_custom_call.1} parent=59 // pred_check_branch
          %532 = sbr.rel (%p530) target = $region68
        $region67: #{tpu_custom_call.1} parent=59 // pred_region
          %534 = dma.done %s526, 1024
        $region68: #{tpu_custom_call.1} parent=59 // pred_fallthru
          _
        %s535 = sand.u32 %s36, 1
        %s536 = scalar_lea.sflag [#allocation6], %s535
        %s537 = sand.u32 %s96, 1
        %s538 = smul.addr %s537, 64
        %s539 = scalar_lea.vmem [#allocation7], %s538
        // Predicated region
        $region69: #{tpu_custom_call.1} parent=59 // pred_check
          %p540 = pneg %p109
        $region70: #{tpu_custom_call.1} parent=59 // pred_check_branch
          %542 = sbr.rel (%p540) target = $region72
        $region71: #{tpu_custom_call.1} parent=59 // pred_region
          %544 = dma.done %s536, 1024
        $region72: #{tpu_custom_call.1} parent=59 // pred_fallthru
          _
        %s545 = sand.u32 %s36, 1
        %s546 = scalar_lea.sflag [#allocation9], %s545
        %s547 = sand.u32 %s122, 1
        %s548 = smul.addr %s547, 64
        %s549 = scalar_lea.vmem [#allocation8], %s548
        // Predicated region
        $region73: #{tpu_custom_call.1} parent=59 // pred_check
          %p550 = pneg %p135
        $region74: #{tpu_custom_call.1} parent=59 // pred_check_branch
          %552 = sbr.rel (%p550) target = $region76
        $region75: #{tpu_custom_call.1} parent=59 // pred_region
          %554 = dma.done %s546, 1024
        $region76: #{tpu_custom_call.1} parent=59 // pred_fallthru
          _
        %s555 = sand.u32 %s36, 1
        %s556 = scalar_lea.sflag [#allocation9], %s555
        %s557 = sand.u32 %s148, 1
        %s558 = smul.addr %s557, 64
        %s559 = scalar_lea.vmem [#allocation10], %s558
        // Predicated region
        $region77: #{tpu_custom_call.1} parent=59 // pred_check
          %p560 = pneg %p161
        $region78: #{tpu_custom_call.1} parent=59 // pred_check_branch
          %562 = sbr.rel (%p560) target = $region80
        $region79: #{tpu_custom_call.1} parent=59 // pred_region
          %564 = dma.done %s556, 1024
        $region80: #{tpu_custom_call.1} parent=59 // pred_fallthru
          _
        %s565 = sand.u32 %s36, 1
        %s566 = scalar_lea.sflag [#allocation12], %s565
        %s567 = sand.u32 %s200, 1
        %s568 = smul.addr %s567, 64
        %s569 = scalar_lea.vmem [#allocation11], %s568
        // Predicated region
        $region81: #{tpu_custom_call.1} parent=59 // pred_check
          %p570 = pneg %p213
        $region82: #{tpu_custom_call.1} parent=59 // pred_check_branch
          %572 = sbr.rel (%p570) target = $region84
        $region83: #{tpu_custom_call.1} parent=59 // pred_region
          %574 = dma.done %s566, 1024
        $region84: #{tpu_custom_call.1} parent=59 // pred_fallthru
          _
        %s575 = sand.u32 %s36, 1
        %s576 = scalar_lea.sflag [#allocation12], %s575
        %s577 = sand.u32 %s252, 1
        %s578 = smul.addr %s577, 64
        %s579 = scalar_lea.vmem [#allocation13], %s578
        // Predicated region
        $region85: #{tpu_custom_call.1} parent=59 // pred_check
          %p580 = pneg %p265
        $region86: #{tpu_custom_call.1} parent=59 // pred_check_branch
          %582 = sbr.rel (%p580) target = $region88
        $region87: #{tpu_custom_call.1} parent=59 // pred_region
          %584 = dma.done %s576, 1024
        $region88: #{tpu_custom_call.1} parent=59 // pred_fallthru
          _
        %s585 = sand.u32 %s44, 1
        %s586 = scalar_lea.sflag [#allocation3], %s585
        %s587 = sand.u32 %s44, 1
        %s588 = smul.addr %s587, 64
        %s589 = scalar_lea.vmem [#allocation2], %s588
        %p590 = pneg %p57
        %p591 = pneg %p54
        %s592 = sand.u32 %s36, 1
        %s593 = scalar_lea.sflag [#allocation6], %s592
        %s594 = sand.u32 %s70, 1
        %s595 = smul.addr %s594, 64
        %s596 = scalar_lea.vmem [#allocation5], %s595
        %p597 = pneg %p83
        %p598 = pneg %p80
        %s599 = sand.u32 %s36, 1
        %s600 = scalar_lea.sflag [#allocation6], %s599
        %s601 = sand.u32 %s96, 1
        %s602 = smul.addr %s601, 64
        %s603 = scalar_lea.vmem [#allocation7], %s602
        %p604 = pneg %p109
        %p605 = pneg %p106
        %s606 = sand.u32 %s36, 1
        %s607 = scalar_lea.sflag [#allocation9], %s606
        %s608 = sand.u32 %s122, 1
        %s609 = smul.addr %s608, 64
        %s610 = scalar_lea.vmem [#allocation8], %s609
        %p611 = pneg %p135
        %p612 = pneg %p132
        %s613 = sand.u32 %s36, 1
        %s614 = scalar_lea.sflag [#allocation9], %s613
        %s615 = sand.u32 %s148, 1
        %s616 = smul.addr %s615, 64
        %s617 = scalar_lea.vmem [#allocation10], %s616
        %p618 = pneg %p161
        %p619 = pneg %p158
        %p620 = scmp.lt.s32.totalorder %s36, 1
        %s621 = scalar_select %p620, %s36, 1
        %s622 = scalar_lea.vmem %s5, %s621
        %p623 = pneg %p187
        %p624 = pneg %p184
        %s625 = sand.u32 %s36, 1
        %s626 = scalar_lea.sflag [#allocation12], %s625
        %s627 = sand.u32 %s200, 1
        %s628 = smul.addr %s627, 64
        %s629 = scalar_lea.vmem [#allocation11], %s628
        %p630 = pneg %p213
        %p631 = pneg %p210
        %p632 = scmp.lt.s32.totalorder %s36, 1
        %s633 = scalar_select %p632, %s36, 1
        %s634 = scalar_lea.vmem %s7, %s633
        %p635 = pneg %p239
        %p636 = pneg %p236
        %s637 = sand.u32 %s36, 1
        %s638 = scalar_lea.sflag [#allocation12], %s637
        %s639 = sand.u32 %s252, 1
        %s640 = smul.addr %s639, 64
        %s641 = scalar_lea.vmem [#allocation13], %s640
        %p642 = pneg %p265
        %p643 = pneg %p262
        %p644 = scmp.lt.s32.totalorder %s36, 1
        %s645 = scalar_select %p644, %s36, 1
        %s646 = scalar_lea.vmem %s9, %s645
        %p647 = pneg %p291
        %p648 = pneg %p288
        %p649 = pneg %p317
        %p650 = pneg %p314
        %s651 = sand.u32 %s304, 1
        %s652 = scalar_lea.sflag [#allocation4], %s651
        %s653 = sand.u32 %s304, 1
        %s654 = smul.addr %s653, 128
        %s655 = scalar_lea.vmem [#allocation14], %s654
        %p656 = scmp.lt.s32.totalorder %s36, 1
        %s657 = scalar_select %p656, %s36, 1
        %s658 = scalar_lea.vmem %s5, %s657
        %p659 = scmp.lt.s32.totalorder %s36, 1
        %s660 = scalar_select %p659, %s36, 1
        %s661 = scalar_lea.vmem %s7, %s660
        %p662 = scmp.lt.s32.totalorder %s36, 1
        %s663 = scalar_select %p662, %s36, 1
        %s664 = scalar_lea.vmem %s9, %s663
        %v665 = vld [vmem:[%s519] sm:$0xf]
        %v666 = vld [vmem:[%s519 + $0x4] sm:$0xf]
        %v667 = vld [vmem:[%s519 + $0x8] sm:$0xf]
        %v668 = vld [vmem:[%s519 + $0xc] sm:$0xf]
        %v669 = vld [vmem:[%s519 + $0x10] sm:$0xf]
        %v670 = vld [vmem:[%s519 + $0x14] sm:$0xf]
        %v671 = vld [vmem:[%s519 + $0x18] sm:$0xf]
        %v672 = vld [vmem:[%s519 + $0x1c] sm:$0xf]
        %v673 = vld [vmem:[%s519 + $0x20] sm:$0xf]
        %v674 = vld [vmem:[%s519 + $0x24] sm:$0xf]
        %v675 = vld [vmem:[%s519 + $0x28] sm:$0xf]
        %v676 = vld [vmem:[%s519 + $0x2c] sm:$0xf]
        %v677 = vld [vmem:[%s519 + $0x30] sm:$0xf]
        %v678 = vld [vmem:[%s519 + $0x34] sm:$0xf]
        %v679 = vld [vmem:[%s519 + $0x38] sm:$0xf]
        %v680 = vld [vmem:[%s519 + $0x3c] sm:$0xf]
        %v681 = vld [vmem:[%s549] sm:$0xf]
        %v682 = vld [vmem:[%s549 + $0x4] sm:$0xf]
        %v683 = vld [vmem:[%s549 + $0x8] sm:$0xf]
        %v684 = vld [vmem:[%s549 + $0xc] sm:$0xf]
        %v685 = vld [vmem:[%s549 + $0x10] sm:$0xf]
        %v686 = vld [vmem:[%s549 + $0x14] sm:$0xf]
        %v687 = vld [vmem:[%s549 + $0x18] sm:$0xf]
        %v688 = vld [vmem:[%s549 + $0x1c] sm:$0xf]
        %v689 = vld [vmem:[%s549 + $0x20] sm:$0xf]
        %v690 = vld [vmem:[%s549 + $0x24] sm:$0xf]
        %v691 = vld [vmem:[%s549 + $0x28] sm:$0xf]
        %v692 = vld [vmem:[%s549 + $0x2c] sm:$0xf]
        %v693 = vld [vmem:[%s549 + $0x30] sm:$0xf]
        %v694 = vld [vmem:[%s549 + $0x34] sm:$0xf]
        %v695 = vld [vmem:[%s549 + $0x38] sm:$0xf]
        %v696 = vld [vmem:[%s549 + $0x3c] sm:$0xf]
        %v697 = vld [vmem:[%s559] sm:$0xf]
        %v698 = vld [vmem:[%s559 + $0x4] sm:$0xf]
        %v699 = vld [vmem:[%s559 + $0x8] sm:$0xf]
        %v700 = vld [vmem:[%s559 + $0xc] sm:$0xf]
        %v701 = vld [vmem:[%s559 + $0x10] sm:$0xf]
        %v702 = vld [vmem:[%s559 + $0x14] sm:$0xf]
        %v703 = vld [vmem:[%s559 + $0x18] sm:$0xf]
        %v704 = vld [vmem:[%s559 + $0x1c] sm:$0xf]
        %v705 = vld [vmem:[%s559 + $0x20] sm:$0xf]
        %v706 = vld [vmem:[%s559 + $0x24] sm:$0xf]
        %v707 = vld [vmem:[%s559 + $0x28] sm:$0xf]
        %v708 = vld [vmem:[%s559 + $0x2c] sm:$0xf]
        %v709 = vld [vmem:[%s559 + $0x30] sm:$0xf]
        %v710 = vld [vmem:[%s559 + $0x34] sm:$0xf]
        %v711 = vld [vmem:[%s559 + $0x38] sm:$0xf]
        %v712 = vld [vmem:[%s559 + $0x3c] sm:$0xf]
        %v713 = vld [vmem:[%s658] sm:$0x1]
        %v730 = vunpack.c.l.b16 %v681
        %v731 = vunpack.c.l.b16 %v682
        %v732 = vunpack.c.l.b16 %v683
        %v733 = vunpack.c.l.b16 %v684
        %v734 = vunpack.c.l.b16 %v685
        %v735 = vunpack.c.l.b16 %v686
        %v736 = vunpack.c.l.b16 %v687
        %v737 = vunpack.c.l.b16 %v688
        %v738 = vunpack.c.l.b16 %v689
        %v739 = vunpack.c.l.b16 %v690
        %v740 = vunpack.c.l.b16 %v691
        %v741 = vunpack.c.l.b16 %v692
        %v742 = vunpack.c.l.b16 %v693
        %v743 = vunpack.c.l.b16 %v694
        %v744 = vunpack.c.l.b16 %v695
        %v745 = vunpack.c.l.b16 %v696
        %v746 = vpack.c.b16 %v731, %v730
        %v747 = vpack.c.b16 %v733, %v732
        %v748 = vpack.c.b16 %v735, %v734
        %v749 = vpack.c.b16 %v737, %v736
        %v750 = vpack.c.b16 %v739, %v738
        %v751 = vpack.c.b16 %v741, %v740
        %v752 = vpack.c.b16 %v743, %v742
        %v753 = vpack.c.b16 %v745, %v744
        %v778 = vunpack.c.l.b16 %v697
        %v779 = vunpack.c.l.b16 %v698
        %v780 = vunpack.c.l.b16 %v699
        %v781 = vunpack.c.l.b16 %v700
        %v782 = vunpack.c.l.b16 %v701
        %v783 = vunpack.c.l.b16 %v702
        %v784 = vunpack.c.l.b16 %v703
        %v785 = vunpack.c.l.b16 %v704
        %v786 = vunpack.c.l.b16 %v705
        %v787 = vunpack.c.l.b16 %v706
        %v788 = vunpack.c.l.b16 %v707
        %v789 = vunpack.c.l.b16 %v708
        %v790 = vunpack.c.l.b16 %v709
        %v791 = vunpack.c.l.b16 %v710
        %v792 = vunpack.c.l.b16 %v711
        %v793 = vunpack.c.l.b16 %v712
        %v794 = vpack.c.b16 %v779, %v778
        %v795 = vpack.c.b16 %v781, %v780
        %v796 = vpack.c.b16 %v783, %v782
        %v797 = vpack.c.b16 %v785, %v784
        %v798 = vpack.c.b16 %v787, %v786
        %v799 = vpack.c.b16 %v789, %v788
        %v800 = vpack.c.b16 %v791, %v790
        %v801 = vpack.c.b16 %v793, %v792
        %810 = vmatpush.bf16.msra.mxu0 %v801
        %811 = vmatpush.bf16.msra.mxu0 %v800
        %812 = vmatpush.bf16.msra.mxu0 %v799
        %813 = vmatpush.bf16.msra.mxu0 %v798
        %814 = vmatpush.bf16.msra.mxu0 %v797
        %815 = vmatpush.bf16.msra.mxu0 %v796
        %816 = vmatpush.bf16.msra.mxu0 %v795
        %817 = vmatpush.bf16.msra.mxu0 %v794
        %818 = vmatmul.bf16.gmra.mxu0 %v746
        %v819 = vpop.f32.mrf.mxu0
        %v820 = vadd.f32 0.0, %v819
        %v821 = vpop.f32.mrf.mxu0
        %v822 = vadd.f32 0.0, %v821
        %823 = vmatmul.bf16.gmra.mxu0 %v747
        %v824 = vpop.f32.mrf.mxu0
        %v825 = vadd.f32 0.0, %v824
        %v826 = vpop.f32.mrf.mxu0
        %v827 = vadd.f32 0.0, %v826
        %828 = vmatmul.bf16.gmra.mxu0 %v748
        %v829 = vpop.f32.mrf.mxu0
        %v830 = vadd.f32 0.0, %v829
        %v831 = vpop.f32.mrf.mxu0
        %v832 = vadd.f32 0.0, %v831
        %833 = vmatmul.bf16.gmra.mxu0 %v749
        %v834 = vpop.f32.mrf.mxu0
        %v835 = vadd.f32 0.0, %v834
        %v836 = vpop.f32.mrf.mxu0
        %v837 = vadd.f32 0.0, %v836
        %838 = vmatmul.bf16.gmra.mxu0 %v750
        %v839 = vpop.f32.mrf.mxu0
        %v840 = vadd.f32 0.0, %v839
        %v841 = vpop.f32.mrf.mxu0
        %v842 = vadd.f32 0.0, %v841
        %843 = vmatmul.bf16.gmra.mxu0 %v751
        %v844 = vpop.f32.mrf.mxu0
        %v845 = vadd.f32 0.0, %v844
        %v846 = vpop.f32.mrf.mxu0
        %v847 = vadd.f32 0.0, %v846
        %848 = vmatmul.bf16.gmra.mxu0 %v752
        %v849 = vpop.f32.mrf.mxu0
        %v850 = vadd.f32 0.0, %v849
        %v851 = vpop.f32.mrf.mxu0
        %v852 = vadd.f32 0.0, %v851
        %853 = vmatmul.bf16.gmra.mxu0 %v753
        %v854 = vpop.f32.mrf.mxu0
        %v855 = vadd.f32 0.0, %v854
        %v856 = vpop.f32.mrf.mxu0
        %v857 = vadd.f32 0.0, %v856
        %858 = vdwg.mxu0
        %v859 = vpack.c.bf16 %v822, %v820
        %v860 = vpack.c.bf16 %v827, %v825
        %v861 = vpack.c.bf16 %v832, %v830
        %v862 = vpack.c.bf16 %v837, %v835
        %v863 = vpack.c.bf16 %v842, %v840
        %v864 = vpack.c.bf16 %v847, %v845
        %v865 = vpack.c.bf16 %v852, %v850
        %v866 = vpack.c.bf16 %v857, %v855
        %v868 = vperm.slane %v713, 0
        %v886 = vunpack.c.l.b16 %v665
        %v887 = vunpack.c.l.b16 %v666
        %v888 = vunpack.c.l.b16 %v667
        %v889 = vunpack.c.l.b16 %v668
        %v890 = vunpack.c.l.b16 %v669
        %v891 = vunpack.c.l.b16 %v670
        %v892 = vunpack.c.l.b16 %v671
        %v893 = vunpack.c.l.b16 %v672
        %v894 = vunpack.c.l.b16 %v673
        %v895 = vunpack.c.l.b16 %v674
        %v896 = vunpack.c.l.b16 %v675
        %v897 = vunpack.c.l.b16 %v676
        %v898 = vunpack.c.l.b16 %v677
        %v899 = vunpack.c.l.b16 %v678
        %v900 = vunpack.c.l.b16 %v679
        %v901 = vunpack.c.l.b16 %v680
        %v902 = vpack.c.b16 %v887, %v886
        %v903 = vpack.c.b16 %v889, %v888
        %v904 = vpack.c.b16 %v891, %v890
        %v905 = vpack.c.b16 %v893, %v892
        %v906 = vpack.c.b16 %v895, %v894
        %v907 = vpack.c.b16 %v897, %v896
        %v908 = vpack.c.b16 %v899, %v898
        %v909 = vpack.c.b16 %v901, %v900
        %918 = vmatpush.bf16.msra.mxu0 %v866
        %919 = vmatpush.bf16.msra.mxu0 %v865
        %920 = vmatpush.bf16.msra.mxu0 %v864
        %921 = vmatpush.bf16.msra.mxu0 %v863
        %922 = vmatpush.bf16.msra.mxu0 %v862
        %923 = vmatpush.bf16.msra.mxu0 %v861
        %924 = vmatpush.bf16.msra.mxu0 %v860
        %925 = vmatpush.bf16.msra.mxu0 %v859
        %926 = vmatmul.bf16.gmra.mxu0 %v902
        %v927 = vpop.f32.mrf.mxu0
        %v928 = vadd.f32 %v868, %v927
        %v929 = vpop.f32.mrf.mxu0
        %v930 = vadd.f32 %v868, %v929
        %931 = vmatmul.bf16.gmra.mxu0 %v903
        %v932 = vpop.f32.mrf.mxu0
        %v933 = vadd.f32 %v868, %v932
        %v934 = vpop.f32.mrf.mxu0
        %v935 = vadd.f32 %v868, %v934
        %936 = vmatmul.bf16.gmra.mxu0 %v904
        %v937 = vpop.f32.mrf.mxu0
        %v938 = vadd.f32 %v868, %v937
        %v939 = vpop.f32.mrf.mxu0
        %v940 = vadd.f32 %v868, %v939
        %941 = vmatmul.bf16.gmra.mxu0 %v905
        %v942 = vpop.f32.mrf.mxu0
        %v943 = vadd.f32 %v868, %v942
        %v944 = vpop.f32.mrf.mxu0
        %v945 = vadd.f32 %v868, %v944
        %946 = vmatmul.bf16.gmra.mxu0 %v906
        %v947 = vpop.f32.mrf.mxu0
        %v948 = vadd.f32 %v868, %v947
        %v949 = vpop.f32.mrf.mxu0
        %v950 = vadd.f32 %v868, %v949
        %951 = vmatmul.bf16.gmra.mxu0 %v907
        %v952 = vpop.f32.mrf.mxu0
        %v953 = vadd.f32 %v868, %v952
        %v954 = vpop.f32.mrf.mxu0
        %v955 = vadd.f32 %v868, %v954
        %956 = vmatmul.bf16.gmra.mxu0 %v908
        %v957 = vpop.f32.mrf.mxu0
        %v958 = vadd.f32 %v868, %v957
        %v959 = vpop.f32.mrf.mxu0
        %v960 = vadd.f32 %v868, %v959
        %961 = vmatmul.bf16.gmra.mxu0 %v909
        %v962 = vpop.f32.mrf.mxu0
        %v963 = vadd.f32 %v868, %v962
        %v964 = vpop.f32.mrf.mxu0
        %v965 = vadd.f32 %v868, %v964
        %966 = vdwg.mxu0
        %v967 = vmax.f32 %v928, 0.0
        %v968 = vmax.f32 %v930, 0.0
        %v969 = vmax.f32 %v933, 0.0
        %v970 = vmax.f32 %v935, 0.0
        %v971 = vmax.f32 %v938, 0.0
        %v972 = vmax.f32 %v940, 0.0
        %v973 = vmax.f32 %v943, 0.0
        %v974 = vmax.f32 %v945, 0.0
        %v975 = vmax.f32 %v948, 0.0
        %v976 = vmax.f32 %v950, 0.0
        %v977 = vmax.f32 %v953, 0.0
        %v978 = vmax.f32 %v955, 0.0
        %v979 = vmax.f32 %v958, 0.0
        %v980 = vmax.f32 %v960, 0.0
        %v981 = vmax.f32 %v963, 0.0
        %v982 = vmax.f32 %v965, 0.0
        %v983 = vld [vmem:[%s529] sm:$0xf]
        %v984 = vld [vmem:[%s529 + $0x4] sm:$0xf]
        %v985 = vld [vmem:[%s529 + $0x8] sm:$0xf]
        %v986 = vld [vmem:[%s529 + $0xc] sm:$0xf]
        %v987 = vld [vmem:[%s529 + $0x10] sm:$0xf]
        %v988 = vld [vmem:[%s529 + $0x14] sm:$0xf]
        %v989 = vld [vmem:[%s529 + $0x18] sm:$0xf]
        %v990 = vld [vmem:[%s529 + $0x1c] sm:$0xf]
        %v991 = vld [vmem:[%s529 + $0x20] sm:$0xf]
        %v992 = vld [vmem:[%s529 + $0x24] sm:$0xf]
        %v993 = vld [vmem:[%s529 + $0x28] sm:$0xf]
        %v994 = vld [vmem:[%s529 + $0x2c] sm:$0xf]
        %v995 = vld [vmem:[%s529 + $0x30] sm:$0xf]
        %v996 = vld [vmem:[%s529 + $0x34] sm:$0xf]
        %v997 = vld [vmem:[%s529 + $0x38] sm:$0xf]
        %v998 = vld [vmem:[%s529 + $0x3c] sm:$0xf]
        %v999 = vpack.c.bf16 %v968, %v967
        %v1000 = vpack.c.bf16 %v970, %v969
        %v1001 = vpack.c.bf16 %v972, %v971
        %v1002 = vpack.c.bf16 %v974, %v973
        %v1003 = vpack.c.bf16 %v976, %v975
        %v1004 = vpack.c.bf16 %v978, %v977
        %v1005 = vpack.c.bf16 %v980, %v979
        %v1006 = vpack.c.bf16 %v982, %v981
        %v1007 = vld [vmem:[%s569] sm:$0xf]
        %v1008 = vld [vmem:[%s569 + $0x4] sm:$0xf]
        %v1009 = vld [vmem:[%s569 + $0x8] sm:$0xf]
        %v1010 = vld [vmem:[%s569 + $0xc] sm:$0xf]
        %v1011 = vld [vmem:[%s569 + $0x10] sm:$0xf]
        %v1012 = vld [vmem:[%s569 + $0x14] sm:$0xf]
        %v1013 = vld [vmem:[%s569 + $0x18] sm:$0xf]
        %v1014 = vld [vmem:[%s569 + $0x1c] sm:$0xf]
        %v1015 = vld [vmem:[%s569 + $0x20] sm:$0xf]
        %v1016 = vld [vmem:[%s569 + $0x24] sm:$0xf]
        %v1017 = vld [vmem:[%s569 + $0x28] sm:$0xf]
        %v1018 = vld [vmem:[%s569 + $0x2c] sm:$0xf]
        %v1019 = vld [vmem:[%s569 + $0x30] sm:$0xf]
        %v1020 = vld [vmem:[%s569 + $0x34] sm:$0xf]
        %v1021 = vld [vmem:[%s569 + $0x38] sm:$0xf]
        %v1022 = vld [vmem:[%s569 + $0x3c] sm:$0xf]
        %v1023 = vld [vmem:[%s661] sm:$0x1]
        %v1040 = vunpack.c.l.b16 %v1007
        %v1041 = vunpack.c.l.b16 %v1008
        %v1042 = vunpack.c.l.b16 %v1009
        %v1043 = vunpack.c.l.b16 %v1010
        %v1044 = vunpack.c.l.b16 %v1011
        %v1045 = vunpack.c.l.b16 %v1012
        %v1046 = vunpack.c.l.b16 %v1013
        %v1047 = vunpack.c.l.b16 %v1014
        %v1048 = vunpack.c.l.b16 %v1015
        %v1049 = vunpack.c.l.b16 %v1016
        %v1050 = vunpack.c.l.b16 %v1017
        %v1051 = vunpack.c.l.b16 %v1018
        %v1052 = vunpack.c.l.b16 %v1019
        %v1053 = vunpack.c.l.b16 %v1020
        %v1054 = vunpack.c.l.b16 %v1021
        %v1055 = vunpack.c.l.b16 %v1022
        %v1056 = vpack.c.b16 %v1041, %v1040
        %v1057 = vpack.c.b16 %v1043, %v1042
        %v1058 = vpack.c.b16 %v1045, %v1044
        %v1059 = vpack.c.b16 %v1047, %v1046
        %v1060 = vpack.c.b16 %v1049, %v1048
        %v1061 = vpack.c.b16 %v1051, %v1050
        %v1062 = vpack.c.b16 %v1053, %v1052
        %v1063 = vpack.c.b16 %v1055, %v1054
        %1072 = vmatpush.bf16.msra.mxu0 %v1063
        %1073 = vmatpush.bf16.msra.mxu0 %v1062
        %1074 = vmatpush.bf16.msra.mxu0 %v1061
        %1075 = vmatpush.bf16.msra.mxu0 %v1060
        %1076 = vmatpush.bf16.msra.mxu0 %v1059
        %1077 = vmatpush.bf16.msra.mxu0 %v1058
        %1078 = vmatpush.bf16.msra.mxu0 %v1057
        %1079 = vmatpush.bf16.msra.mxu0 %v1056
        %1080 = vmatmul.bf16.gmra.mxu0 %v999
        %v1081 = vpop.f32.mrf.mxu0
        %v1082 = vadd.f32 0.0, %v1081
        %v1083 = vpop.f32.mrf.mxu0
        %v1084 = vadd.f32 0.0, %v1083
        %1085 = vmatmul.bf16.gmra.mxu0 %v1000
        %v1086 = vpop.f32.mrf.mxu0
        %v1087 = vadd.f32 0.0, %v1086
        %v1088 = vpop.f32.mrf.mxu0
        %v1089 = vadd.f32 0.0, %v1088
        %1090 = vmatmul.bf16.gmra.mxu0 %v1001
        %v1091 = vpop.f32.mrf.mxu0
        %v1092 = vadd.f32 0.0, %v1091
        %v1093 = vpop.f32.mrf.mxu0
        %v1094 = vadd.f32 0.0, %v1093
        %1095 = vmatmul.bf16.gmra.mxu0 %v1002
        %v1096 = vpop.f32.mrf.mxu0
        %v1097 = vadd.f32 0.0, %v1096
        %v1098 = vpop.f32.mrf.mxu0
        %v1099 = vadd.f32 0.0, %v1098
        %1100 = vmatmul.bf16.gmra.mxu0 %v1003
        %v1101 = vpop.f32.mrf.mxu0
        %v1102 = vadd.f32 0.0, %v1101
        %v1103 = vpop.f32.mrf.mxu0
        %v1104 = vadd.f32 0.0, %v1103
        %1105 = vmatmul.bf16.gmra.mxu0 %v1004
        %v1106 = vpop.f32.mrf.mxu0
        %v1107 = vadd.f32 0.0, %v1106
        %v1108 = vpop.f32.mrf.mxu0
        %v1109 = vadd.f32 0.0, %v1108
        %1110 = vmatmul.bf16.gmra.mxu0 %v1005
        %v1111 = vpop.f32.mrf.mxu0
        %v1112 = vadd.f32 0.0, %v1111
        %v1113 = vpop.f32.mrf.mxu0
        %v1114 = vadd.f32 0.0, %v1113
        %1115 = vmatmul.bf16.gmra.mxu0 %v1006
        %v1116 = vpop.f32.mrf.mxu0
        %v1117 = vadd.f32 0.0, %v1116
        %v1118 = vpop.f32.mrf.mxu0
        %v1119 = vadd.f32 0.0, %v1118
        %1120 = vdwg.mxu0
        %v1121 = vpack.c.bf16 %v1084, %v1082
        %v1122 = vpack.c.bf16 %v1089, %v1087
        %v1123 = vpack.c.bf16 %v1094, %v1092
        %v1124 = vpack.c.bf16 %v1099, %v1097
        %v1125 = vpack.c.bf16 %v1104, %v1102
        %v1126 = vpack.c.bf16 %v1109, %v1107
        %v1127 = vpack.c.bf16 %v1114, %v1112
        %v1128 = vpack.c.bf16 %v1119, %v1117
        %v1130 = vperm.slane %v1023, 0
        %v1148 = vunpack.c.l.b16 %v983
        %v1149 = vunpack.c.l.b16 %v984
        %v1150 = vunpack.c.l.b16 %v985
        %v1151 = vunpack.c.l.b16 %v986
        %v1152 = vunpack.c.l.b16 %v987
        %v1153 = vunpack.c.l.b16 %v988
        %v1154 = vunpack.c.l.b16 %v989
        %v1155 = vunpack.c.l.b16 %v990
        %v1156 = vunpack.c.l.b16 %v991
        %v1157 = vunpack.c.l.b16 %v992
        %v1158 = vunpack.c.l.b16 %v993
        %v1159 = vunpack.c.l.b16 %v994
        %v1160 = vunpack.c.l.b16 %v995
        %v1161 = vunpack.c.l.b16 %v996
        %v1162 = vunpack.c.l.b16 %v997
        %v1163 = vunpack.c.l.b16 %v998
        %v1164 = vpack.c.b16 %v1149, %v1148
        %v1165 = vpack.c.b16 %v1151, %v1150
        %v1166 = vpack.c.b16 %v1153, %v1152
        %v1167 = vpack.c.b16 %v1155, %v1154
        %v1168 = vpack.c.b16 %v1157, %v1156
        %v1169 = vpack.c.b16 %v1159, %v1158
        %v1170 = vpack.c.b16 %v1161, %v1160
        %v1171 = vpack.c.b16 %v1163, %v1162
        %1180 = vmatpush.bf16.msra.mxu0 %v1128
        %1181 = vmatpush.bf16.msra.mxu0 %v1127
        %1182 = vmatpush.bf16.msra.mxu0 %v1126
        %1183 = vmatpush.bf16.msra.mxu0 %v1125
        %1184 = vmatpush.bf16.msra.mxu0 %v1124
        %1185 = vmatpush.bf16.msra.mxu0 %v1123
        %1186 = vmatpush.bf16.msra.mxu0 %v1122
        %1187 = vmatpush.bf16.msra.mxu0 %v1121
        %1188 = vmatmul.bf16.gmra.mxu0 %v1164
        %v1189 = vpop.f32.mrf.mxu0
        %v1190 = vadd.f32 %v1130, %v1189
        %v1191 = vpop.f32.mrf.mxu0
        %v1192 = vadd.f32 %v1130, %v1191
        %1193 = vmatmul.bf16.gmra.mxu0 %v1165
        %v1194 = vpop.f32.mrf.mxu0
        %v1195 = vadd.f32 %v1130, %v1194
        %v1196 = vpop.f32.mrf.mxu0
        %v1197 = vadd.f32 %v1130, %v1196
        %1198 = vmatmul.bf16.gmra.mxu0 %v1166
        %v1199 = vpop.f32.mrf.mxu0
        %v1200 = vadd.f32 %v1130, %v1199
        %v1201 = vpop.f32.mrf.mxu0
        %v1202 = vadd.f32 %v1130, %v1201
        %1203 = vmatmul.bf16.gmra.mxu0 %v1167
        %v1204 = vpop.f32.mrf.mxu0
        %v1205 = vadd.f32 %v1130, %v1204
        %v1206 = vpop.f32.mrf.mxu0
        %v1207 = vadd.f32 %v1130, %v1206
        %1208 = vmatmul.bf16.gmra.mxu0 %v1168
        %v1209 = vpop.f32.mrf.mxu0
        %v1210 = vadd.f32 %v1130, %v1209
        %v1211 = vpop.f32.mrf.mxu0
        %v1212 = vadd.f32 %v1130, %v1211
        %1213 = vmatmul.bf16.gmra.mxu0 %v1169
        %v1214 = vpop.f32.mrf.mxu0
        %v1215 = vadd.f32 %v1130, %v1214
        %v1216 = vpop.f32.mrf.mxu0
        %v1217 = vadd.f32 %v1130, %v1216
        %1218 = vmatmul.bf16.gmra.mxu0 %v1170
        %v1219 = vpop.f32.mrf.mxu0
        %v1220 = vadd.f32 %v1130, %v1219
        %v1221 = vpop.f32.mrf.mxu0
        %v1222 = vadd.f32 %v1130, %v1221
        %1223 = vmatmul.bf16.gmra.mxu0 %v1171
        %v1224 = vpop.f32.mrf.mxu0
        %v1225 = vadd.f32 %v1130, %v1224
        %v1226 = vpop.f32.mrf.mxu0
        %v1227 = vadd.f32 %v1130, %v1226
        %1228 = vdwg.mxu0
        %v1229 = vmax.f32 %v1190, 0.0
        %v1230 = vmax.f32 %v1192, 0.0
        %v1231 = vmax.f32 %v1195, 0.0
        %v1232 = vmax.f32 %v1197, 0.0
        %v1233 = vmax.f32 %v1200, 0.0
        %v1234 = vmax.f32 %v1202, 0.0
        %v1235 = vmax.f32 %v1205, 0.0
        %v1236 = vmax.f32 %v1207, 0.0
        %v1237 = vmax.f32 %v1210, 0.0
        %v1238 = vmax.f32 %v1212, 0.0
        %v1239 = vmax.f32 %v1215, 0.0
        %v1240 = vmax.f32 %v1217, 0.0
        %v1241 = vmax.f32 %v1220, 0.0
        %v1242 = vmax.f32 %v1222, 0.0
        %v1243 = vmax.f32 %v1225, 0.0
        %v1244 = vmax.f32 %v1227, 0.0
        %v1245 = vld [vmem:[%s539] sm:$0xf]
        %v1246 = vld [vmem:[%s539 + $0x4] sm:$0xf]
        %v1247 = vld [vmem:[%s539 + $0x8] sm:$0xf]
        %v1248 = vld [vmem:[%s539 + $0xc] sm:$0xf]
        %v1249 = vld [vmem:[%s539 + $0x10] sm:$0xf]
        %v1250 = vld [vmem:[%s539 + $0x14] sm:$0xf]
        %v1251 = vld [vmem:[%s539 + $0x18] sm:$0xf]
        %v1252 = vld [vmem:[%s539 + $0x1c] sm:$0xf]
        %v1253 = vld [vmem:[%s539 + $0x20] sm:$0xf]
        %v1254 = vld [vmem:[%s539 + $0x24] sm:$0xf]
        %v1255 = vld [vmem:[%s539 + $0x28] sm:$0xf]
        %v1256 = vld [vmem:[%s539 + $0x2c] sm:$0xf]
        %v1257 = vld [vmem:[%s539 + $0x30] sm:$0xf]
        %v1258 = vld [vmem:[%s539 + $0x34] sm:$0xf]
        %v1259 = vld [vmem:[%s539 + $0x38] sm:$0xf]
        %v1260 = vld [vmem:[%s539 + $0x3c] sm:$0xf]
        %v1261 = vpack.c.bf16 %v1230, %v1229
        %v1262 = vpack.c.bf16 %v1232, %v1231
        %v1263 = vpack.c.bf16 %v1234, %v1233
        %v1264 = vpack.c.bf16 %v1236, %v1235
        %v1265 = vpack.c.bf16 %v1238, %v1237
        %v1266 = vpack.c.bf16 %v1240, %v1239
        %v1267 = vpack.c.bf16 %v1242, %v1241
        %v1268 = vpack.c.bf16 %v1244, %v1243
        %v1269 = vld [vmem:[%s579] sm:$0xf]
        %v1270 = vld [vmem:[%s579 + $0x4] sm:$0xf]
        %v1271 = vld [vmem:[%s579 + $0x8] sm:$0xf]
        %v1272 = vld [vmem:[%s579 + $0xc] sm:$0xf]
        %v1273 = vld [vmem:[%s579 + $0x10] sm:$0xf]
        %v1274 = vld [vmem:[%s579 + $0x14] sm:$0xf]
        %v1275 = vld [vmem:[%s579 + $0x18] sm:$0xf]
        %v1276 = vld [vmem:[%s579 + $0x1c] sm:$0xf]
        %v1277 = vld [vmem:[%s579 + $0x20] sm:$0xf]
        %v1278 = vld [vmem:[%s579 + $0x24] sm:$0xf]
        %v1279 = vld [vmem:[%s579 + $0x28] sm:$0xf]
        %v1280 = vld [vmem:[%s579 + $0x2c] sm:$0xf]
        %v1281 = vld [vmem:[%s579 + $0x30] sm:$0xf]
        %v1282 = vld [vmem:[%s579 + $0x34] sm:$0xf]
        %v1283 = vld [vmem:[%s579 + $0x38] sm:$0xf]
        %v1284 = vld [vmem:[%s579 + $0x3c] sm:$0xf]
        %v1285 = vld [vmem:[%s664] sm:$0x1]
        %v1302 = vunpack.c.l.b16 %v1269
        %v1303 = vunpack.c.l.b16 %v1270
        %v1304 = vunpack.c.l.b16 %v1271
        %v1305 = vunpack.c.l.b16 %v1272
        %v1306 = vunpack.c.l.b16 %v1273
        %v1307 = vunpack.c.l.b16 %v1274
        %v1308 = vunpack.c.l.b16 %v1275
        %v1309 = vunpack.c.l.b16 %v1276
        %v1310 = vunpack.c.l.b16 %v1277
        %v1311 = vunpack.c.l.b16 %v1278
        %v1312 = vunpack.c.l.b16 %v1279
        %v1313 = vunpack.c.l.b16 %v1280
        %v1314 = vunpack.c.l.b16 %v1281
        %v1315 = vunpack.c.l.b16 %v1282
        %v1316 = vunpack.c.l.b16 %v1283
        %v1317 = vunpack.c.l.b16 %v1284
        %v1318 = vpack.c.b16 %v1303, %v1302
        %v1319 = vpack.c.b16 %v1305, %v1304
        %v1320 = vpack.c.b16 %v1307, %v1306
        %v1321 = vpack.c.b16 %v1309, %v1308
        %v1322 = vpack.c.b16 %v1311, %v1310
        %v1323 = vpack.c.b16 %v1313, %v1312
        %v1324 = vpack.c.b16 %v1315, %v1314
        %v1325 = vpack.c.b16 %v1317, %v1316
        %1334 = vmatpush.bf16.msra.mxu0 %v1325
        %1335 = vmatpush.bf16.msra.mxu0 %v1324
        %1336 = vmatpush.bf16.msra.mxu0 %v1323
        %1337 = vmatpush.bf16.msra.mxu0 %v1322
        %1338 = vmatpush.bf16.msra.mxu0 %v1321
        %1339 = vmatpush.bf16.msra.mxu0 %v1320
        %1340 = vmatpush.bf16.msra.mxu0 %v1319
        %1341 = vmatpush.bf16.msra.mxu0 %v1318
        %1342 = vmatmul.bf16.gmra.mxu0 %v1261
        %v1343 = vpop.f32.mrf.mxu0
        %v1344 = vadd.f32 0.0, %v1343
        %v1345 = vpop.f32.mrf.mxu0
        %v1346 = vadd.f32 0.0, %v1345
        %1347 = vmatmul.bf16.gmra.mxu0 %v1262
        %v1348 = vpop.f32.mrf.mxu0
        %v1349 = vadd.f32 0.0, %v1348
        %v1350 = vpop.f32.mrf.mxu0
        %v1351 = vadd.f32 0.0, %v1350
        %1352 = vmatmul.bf16.gmra.mxu0 %v1263
        %v1353 = vpop.f32.mrf.mxu0
        %v1354 = vadd.f32 0.0, %v1353
        %v1355 = vpop.f32.mrf.mxu0
        %v1356 = vadd.f32 0.0, %v1355
        %1357 = vmatmul.bf16.gmra.mxu0 %v1264
        %v1358 = vpop.f32.mrf.mxu0
        %v1359 = vadd.f32 0.0, %v1358
        %v1360 = vpop.f32.mrf.mxu0
        %v1361 = vadd.f32 0.0, %v1360
        %1362 = vmatmul.bf16.gmra.mxu0 %v1265
        %v1363 = vpop.f32.mrf.mxu0
        %v1364 = vadd.f32 0.0, %v1363
        %v1365 = vpop.f32.mrf.mxu0
        %v1366 = vadd.f32 0.0, %v1365
        %1367 = vmatmul.bf16.gmra.mxu0 %v1266
        %v1368 = vpop.f32.mrf.mxu0
        %v1369 = vadd.f32 0.0, %v1368
        %v1370 = vpop.f32.mrf.mxu0
        %v1371 = vadd.f32 0.0, %v1370
        %1372 = vmatmul.bf16.gmra.mxu0 %v1267
        %v1373 = vpop.f32.mrf.mxu0
        %v1374 = vadd.f32 0.0, %v1373
        %v1375 = vpop.f32.mrf.mxu0
        %v1376 = vadd.f32 0.0, %v1375
        %1377 = vmatmul.bf16.gmra.mxu0 %v1268
        %v1378 = vpop.f32.mrf.mxu0
        %v1379 = vadd.f32 0.0, %v1378
        %v1380 = vpop.f32.mrf.mxu0
        %v1381 = vadd.f32 0.0, %v1380
        %1382 = vdwg.mxu0
        %v1383 = vpack.c.bf16 %v1346, %v1344
        %v1384 = vpack.c.bf16 %v1351, %v1349
        %v1385 = vpack.c.bf16 %v1356, %v1354
        %v1386 = vpack.c.bf16 %v1361, %v1359
        %v1387 = vpack.c.bf16 %v1366, %v1364
        %v1388 = vpack.c.bf16 %v1371, %v1369
        %v1389 = vpack.c.bf16 %v1376, %v1374
        %v1390 = vpack.c.bf16 %v1381, %v1379
        %v1392 = vperm.slane %v1285, 0
        %v1410 = vunpack.c.l.b16 %v1245
        %v1411 = vunpack.c.l.b16 %v1246
        %v1412 = vunpack.c.l.b16 %v1247
        %v1413 = vunpack.c.l.b16 %v1248
        %v1414 = vunpack.c.l.b16 %v1249
        %v1415 = vunpack.c.l.b16 %v1250
        %v1416 = vunpack.c.l.b16 %v1251
        %v1417 = vunpack.c.l.b16 %v1252
        %v1418 = vunpack.c.l.b16 %v1253
        %v1419 = vunpack.c.l.b16 %v1254
        %v1420 = vunpack.c.l.b16 %v1255
        %v1421 = vunpack.c.l.b16 %v1256
        %v1422 = vunpack.c.l.b16 %v1257
        %v1423 = vunpack.c.l.b16 %v1258
        %v1424 = vunpack.c.l.b16 %v1259
        %v1425 = vunpack.c.l.b16 %v1260
        %v1426 = vpack.c.b16 %v1411, %v1410
        %v1427 = vpack.c.b16 %v1413, %v1412
        %v1428 = vpack.c.b16 %v1415, %v1414
        %v1429 = vpack.c.b16 %v1417, %v1416
        %v1430 = vpack.c.b16 %v1419, %v1418
        %v1431 = vpack.c.b16 %v1421, %v1420
        %v1432 = vpack.c.b16 %v1423, %v1422
        %v1433 = vpack.c.b16 %v1425, %v1424
        %1442 = vmatpush.bf16.msra.mxu0 %v1390
        %1443 = vmatpush.bf16.msra.mxu0 %v1389
        %1444 = vmatpush.bf16.msra.mxu0 %v1388
        %1445 = vmatpush.bf16.msra.mxu0 %v1387
        %1446 = vmatpush.bf16.msra.mxu0 %v1386
        %1447 = vmatpush.bf16.msra.mxu0 %v1385
        %1448 = vmatpush.bf16.msra.mxu0 %v1384
        %1449 = vmatpush.bf16.msra.mxu0 %v1383
        %1450 = vmatmul.bf16.gmra.mxu0 %v1426
        %v1451 = vpop.f32.mrf.mxu0
        %v1452 = vadd.f32 %v1392, %v1451
        %v1453 = vpop.f32.mrf.mxu0
        %v1454 = vadd.f32 %v1392, %v1453
        %1455 = vmatmul.bf16.gmra.mxu0 %v1427
        %v1456 = vpop.f32.mrf.mxu0
        %v1457 = vadd.f32 %v1392, %v1456
        %v1458 = vpop.f32.mrf.mxu0
        %v1459 = vadd.f32 %v1392, %v1458
        %1460 = vmatmul.bf16.gmra.mxu0 %v1428
        %v1461 = vpop.f32.mrf.mxu0
        %v1462 = vadd.f32 %v1392, %v1461
        %v1463 = vpop.f32.mrf.mxu0
        %v1464 = vadd.f32 %v1392, %v1463
        %1465 = vmatmul.bf16.gmra.mxu0 %v1429
        %v1466 = vpop.f32.mrf.mxu0
        %v1467 = vadd.f32 %v1392, %v1466
        %v1468 = vpop.f32.mrf.mxu0
        %v1469 = vadd.f32 %v1392, %v1468
        %1470 = vmatmul.bf16.gmra.mxu0 %v1430
        %v1471 = vpop.f32.mrf.mxu0
        %v1472 = vadd.f32 %v1392, %v1471
        %v1473 = vpop.f32.mrf.mxu0
        %v1474 = vadd.f32 %v1392, %v1473
        %1475 = vmatmul.bf16.gmra.mxu0 %v1431
        %v1476 = vpop.f32.mrf.mxu0
        %v1477 = vadd.f32 %v1392, %v1476
        %v1478 = vpop.f32.mrf.mxu0
        %v1479 = vadd.f32 %v1392, %v1478
        %1480 = vmatmul.bf16.gmra.mxu0 %v1432
        %v1481 = vpop.f32.mrf.mxu0
        %v1482 = vadd.f32 %v1392, %v1481
        %v1483 = vpop.f32.mrf.mxu0
        %v1484 = vadd.f32 %v1392, %v1483
        %1485 = vmatmul.bf16.gmra.mxu0 %v1433
        %v1486 = vpop.f32.mrf.mxu0
        %v1487 = vadd.f32 %v1392, %v1486
        %v1488 = vpop.f32.mrf.mxu0
        %v1489 = vadd.f32 %v1392, %v1488
        %1490 = vdwg.mxu0
        %1491 = vst [vmem:[%s655] sm:$0xff] %v1452
        %1492 = vst [vmem:[%s655 + $0x8] sm:$0xff] %v1454
        %1493 = vst [vmem:[%s655 + $0x10] sm:$0xff] %v1457
        %1494 = vst [vmem:[%s655 + $0x18] sm:$0xff] %v1459
        %1495 = vst [vmem:[%s655 + $0x20] sm:$0xff] %v1462
        %1496 = vst [vmem:[%s655 + $0x28] sm:$0xff] %v1464
        %1497 = vst [vmem:[%s655 + $0x30] sm:$0xff] %v1467
        %1498 = vst [vmem:[%s655 + $0x38] sm:$0xff] %v1469
        %1499 = vst [vmem:[%s655 + $0x40] sm:$0xff] %v1472
        %1500 = vst [vmem:[%s655 + $0x48] sm:$0xff] %v1474
        %1501 = vst [vmem:[%s655 + $0x50] sm:$0xff] %v1477
        %1502 = vst [vmem:[%s655 + $0x58] sm:$0xff] %v1479
        %1503 = vst [vmem:[%s655 + $0x60] sm:$0xff] %v1482
        %1504 = vst [vmem:[%s655 + $0x68] sm:$0xff] %v1484
        %1505 = vst [vmem:[%s655 + $0x70] sm:$0xff] %v1487
        %1506 = vst [vmem:[%s655 + $0x78] sm:$0xff] %v1489
        %s1507 = sand.u32 %s304, 1
        %s1508 = scalar_lea.sflag [#allocation4], %s1507
        %s1509 = sand.u32 %s304, 1
        %s1510 = smul.addr %s1509, 128
        %s1511 = scalar_lea.vmem [#allocation14], %s1510
        // Predicated region
        $region89: #{tpu_custom_call.1} parent=59 // pred_check
          %p1512 = pneg %p314
        $region90: #{tpu_custom_call.1} parent=59 // pred_check_branch
          %1514 = sbr.rel (%p1512) target = $region92
        $region91: #{tpu_custom_call.1} parent=59 // pred_region
          %1516 = vsyncadd %s1508, 0
          %s1517 = smul.addr %s36, 16
          %s1518 = smul.addr %s1517, 8
          %s1519 = scalar_lea.hbm %s10, %s1518
          %s1520 = sshll.u32 %s1511, 4
          %s1521 = int_to_ptr.vmem [resolvable:$true] %s1520
          %s1522 = sshll.u32 %s1519, 4
          %s1523 = int_to_ptr.hbm [resolvable:$true] %s1522
          %1528 = dma.vmem_to_hbm [thread:$0]  %s1521, 2048, %s1523, %s1508, 128, 128, 8
        $region92: #{tpu_custom_call.1} parent=59 // pred_fallthru
          _
      $region60: #{tpu_custom_call.1} parent=5 // pred_fallthru
        _
      %p1529 = scmp.le.s32.totalorder 2, %s31
      // Predicated region
      $region93: #{tpu_custom_call.1} parent=5 // pred_check
        %p1530 = pneg %p1529
      $region94: #{tpu_custom_call.1} parent=5 // pred_check_branch
        %1532 = sbr.rel (%p1530) target = $region96
      $region95: #{tpu_custom_call.1} parent=5 // pred_region
        %s1533 = ssub.s32 %s31, 2
        // Predicated region
        $region97: #{tpu_custom_call.1} parent=95 // pred_check
          %p1534 = pneg %p320
        $region98: #{tpu_custom_call.1} parent=95 // pred_check_branch
          %1536 = sbr.rel (%p1534) target = $region100
        $region99: #{tpu_custom_call.1} parent=95 // pred_region
          %s1537 = sand.u32 %s305, 1
          %s1538 = scalar_lea.sflag [#allocation4], %s1537
          %s1539 = sand.u32 %s305, 1
          %s1540 = smul.addr %s1539, 128
          %s1541 = scalar_lea.vmem [#allocation14], %s1540
          %1543 = dma.done %s1538, 2048
        $region100: #{tpu_custom_call.1} parent=95 // pred_fallthru
          _
      $region96: #{tpu_custom_call.1} parent=5 // pred_fallthru
        _
    $region6: #{tpu_custom_call.1} parent=1 // loop_footer
      %s35 = sadd.s32 1, %s31
    $region7: #{tpu_custom_call.1} parent=1 // loop_footer_branch
      %30 = sbr.rel target = $region3
    $region8: #{tpu_custom_call.1} parent=1 // loop_exit
      _
    %1544 = vsyncpa [#allocation3], 1
    %s1545 = scalar_lea.sflag [#allocation3], 1
    %1546 = vsyncpa %s1545, 1
    %1547 = vsyncpa [#allocation6], 1
    %s1548 = scalar_lea.sflag [#allocation6], 1
    %1549 = vsyncpa %s1548, 1
    %1550 = vsyncpa [#allocation9], 1
    %s1551 = scalar_lea.sflag [#allocation9], 1
    %1552 = vsyncpa %s1551, 1
    %1553 = vsyncpa [#allocation12], 1
    %s1554 = scalar_lea.sflag [#allocation12], 1
    %1555 = vsyncpa %s1554, 1
    %1556 = vsyncpa [#allocation4], 1
    %s1557 = scalar_lea.sflag [#allocation4], 1
    %1558 = vsyncpa %s1557, 1

</llo_original>
